<compile_context>
chip_gen: v6e
topology: v6e:2x2x1
jax: 0.10.0
libtpu: 0.0.40
codegen_flags: <defaults>
</compile_context>

<pallas_src>
import numpy as np
import jax
import jax.numpy as jnp
from jax.experimental import pallas as pl
from jax.experimental.pallas import tpu as pltpu

K_CTX = 16   # ctx_future_context_size
EPS = 1e-6


# ----------------------------------------------------------------------------
# Fused head + loss-reduction kernel
# ----------------------------------------------------------------------------
def _make_fused_kernel(B, S, K, tv, lane_out, pad_rows, conv_plan):
    """conv_plan = ("doubling", q, r, n_steps)   with coeffs[delta] = q * r**delta
       or        = ("direct",   coeffs_tuple)    coeffs[delta] = exp_decay[K-1-delta]."""

    def kernel(win_ref, dup_ref, emb_ref, gn_ref, gc_ref, wlm_ref, wctx_ref,   # inputs
               logits_ref, stats_ref,                                           # outputs
               hn_ref, hc_ref, cpad_ref, m_ref, l_ref, tl_ref, bce_ref):        # scratch
        j = pl.program_id(1)

        # ---- once per batch element: both RMSNorms -> bf16 scratch, reset accums
        @pl.when(j == 0)
        def _init():
            h = emb_ref[0]                                                       # (S, D) f32
            inv1 = jax.lax.rsqrt(jnp.mean(h * h, axis=-1, keepdims=True) + EPS)
            hn = h * inv1 * gn_ref[...]                                          # output_norm
            inv2 = jax.lax.rsqrt(jnp.mean(hn * hn, axis=-1, keepdims=True) + EPS)
            hc = hn * inv2 * gc_ref[...]                                         # context_norm
            hn_ref[...] = hn.astype(hn_ref.dtype)
            hc_ref[...] = hc.astype(hc_ref.dtype)
            # zero only the (sublane-aligned) pad region used by the causal conv
            cpad_ref[0:pad_rows, :] = jnp.zeros((pad_rows, tv), jnp.float32)
            m_ref[...] = jnp.full_like(m_ref, -jnp.inf)
            l_ref[...] = jnp.zeros_like(l_ref)
            tl_ref[...] = jnp.zeros_like(tl_ref)
            bce_ref[...] = jnp.zeros_like(bce_ref)

        # ---- projections: bf16 x bf16 -> f32 accumulate on the MXU
        logits0 = jnp.dot(hn_ref[...], wlm_ref[...],
                          preferred_element_type=jnp.float32)                    # (S, tv)
        c = jnp.dot(hc_ref[...], wctx_ref[...],
                    preferred_element_type=jnp.float32)                          # (S, tv)

        # ---- causal exp-decay conv1d over time
        #      context[t] = sum_{delta=0..K-1} coeffs[delta] * c[t-delta]
        if conv_plan[0] == "doubling":
            # geometric coeffs -> log2(K) shift-doubling steps (stores at aligned offset)
            _, q, r, n_steps = conv_plan
            s = c
            shift = 1
            factor = r
            for _ in range(n_steps):
                cpad_ref[pad_rows:, :] = s
                lo = pad_rows - shift
                s = s + factor * cpad_ref[lo:lo + S, :]
                shift *= 2
                factor = factor * factor
            ctx = q * s
        else:
            coeffs = conv_plan[1]
            cpad_ref[pad_rows:, :] = c
            ctx = coeffs[0] * c
            for delta in range(1, K):
                if delta >= S:
                    continue
                lo = pad_rows - delta
                ctx = ctx + coeffs[delta] * cpad_ref[lo:lo + S, :]

        logits_tile = logits0 + ctx
        logits_ref[0] = logits_tile

        # ---- BCE targets / duplicate weights built in-kernel from raw windows
        vids = j * tv + jax.lax.broadcasted_iota(jnp.int32, (S, tv), 1)
        w_cur = win_ref[0]                                                       # (S, K) int32
        tgt = w_cur[:, 0:1]                                                      # CE target = y[:, :S]

        t_mask = (w_cur[:, 0:1] == vids)                                         # token appears in window
        for k in range(1, K):
            t_mask = jnp.logical_or(t_mask, w_cur[:, k:k + 1] == vids)

        dup = (dup_ref[0][:, 0:1] == vids)                                       # appears >1 in ANY batch's window
        for b2 in range(B):
            d2 = dup_ref[b2]
            for k in range(K):
                if b2 == 0 and k == 0:
                    continue
                dup = jnp.logical_or(dup, d2[:, k:k + 1] == vids)

        t = t_mask.astype(jnp.float32)
        wgt = jnp.where(dup, 1.5, 1.0)
        bce_elem = (jnp.maximum(c, 0.0) - c * t
                    + jnp.log1p(jnp.exp(-jnp.abs(c))))
        bce_ref[...] += jnp.sum(wgt * bce_elem, axis=-1, keepdims=True)

        # ---- online log-sum-exp + target logit for the cross entropy
        m_prev = m_ref[...]
        m_new = jnp.maximum(m_prev, jnp.max(logits_tile, axis=-1, keepdims=True))
        l_ref[...] = (l_ref[...] * jnp.exp(m_prev - m_new)
                      + jnp.sum(jnp.exp(logits_tile - m_new), axis=-1, keepdims=True))
        m_ref[...] = m_new
        tl_ref[...] += jnp.sum(jnp.where(vids == tgt, logits_tile, 0.0),
                               axis=-1, keepdims=True)

        # ---- finalize per-row loss statistics (lane-dense packed output)
        @pl.when(j == pl.num_programs(1) - 1)
        def _finalize():
            valid = (tgt != -1).astype(jnp.float32)                              # (S, 1)
            ce = (m_ref[...] + jnp.log(l_ref[...]) - tl_ref[...]) * valid        # (S, 1)
            lane = jax.lax.broadcasted_iota(jnp.int32, (S, lane_out), 1)
            stats_ref[0] = (jnp.where(lane == 0, ce, 0.0)
                            + jnp.where(lane == 1, valid, 0.0)
                            + jnp.where(lane == 2, bce_ref[...], 0.0))

    return kernel


def fused_head_and_losses(windows, dup_tok, emb, g_norm, g_ctx, w_lm, w_ctx,
                          exp_decay, *, tv=128):
    B, S, D = emb.shape
    V = w_lm.shape[1]
    K = int(exp_decay.shape[0])
    assert V % tv == 0
    LANE = 128
    PADR = max(8, ((K - 1 + 7) // 8) * 8)   # sublane-aligned pad region for the causal conv

    # coeffs[delta] = exp_decay[K-1-delta]; detect geometric decay (the module's
    # exp(-0.5*delta)/Z) and use log2(K)-step doubling; otherwise direct K-term MAC.
    coeffs = np.asarray(exp_decay, dtype=np.float64)[::-1]
    is_pow2 = K >= 2 and (K & (K - 1)) == 0
    r = float(coeffs[1] / coeffs[0]) if K >= 2 else 0.0
    geom = (is_pow2 and
            np.allclose(coeffs, coeffs[0] * (r ** np.arange(K)), rtol=1e-5, atol=0.0))
    if geom:
        conv_plan = ("doubling", float(coeffs[0]), r, int(round(np.log2(K))))
    else:
        conv_plan = ("direct", tuple(float(v) for v in coeffs))

    kernel = _make_fused_kernel(B, S, K, tv, LANE, PADR, conv_plan)

    return pl.pallas_call(
        kernel,
        out_shape=(jax.ShapeDtypeStruct((B, S, V), jnp.float32),     # logits
                   jax.ShapeDtypeStruct((B, S, LANE), jnp.float32)), # packed row stats
        grid_spec=pltpu.PrefetchScalarGridSpec(
            num_scalar_prefetch=0,
            grid=(B, V // tv),
            in_specs=[
                pl.BlockSpec((1, S, K), lambda b, j: (b, 0, 0)),     # current batch's windows
                pl.BlockSpec((B, S, K), lambda b, j: (0, 0, 0)),     # duplicate-token sentinels (all batches)
                pl.BlockSpec((1, S, D), lambda b, j: (b, 0, 0)),     # last_hidden_state
                pl.BlockSpec((1, D), lambda b, j: (0, 0)),           # output_norm.weight
                pl.BlockSpec((1, D), lambda b, j: (0, 0)),           # context_norm.weight
                pl.BlockSpec((D, tv), lambda b, j: (0, j)),          # lm_head W (bf16)
                pl.BlockSpec((D, tv), lambda b, j: (0, j)),          # context head W (bf16)
            ],
            out_specs=[
                pl.BlockSpec((1, S, tv), lambda b, j: (b, 0, j)),    # logits tile
                pl.BlockSpec((1, S, LANE), lambda b, j: (b, 0, 0)),  # row stats (written at last j)
            ],
            scratch_shapes=[
                pltpu.VMEM((S, D), jnp.bfloat16),           # hn  (output_norm(emb))
                pltpu.VMEM((S, D), jnp.bfloat16),           # hc  (context_norm(hn))
                pltpu.VMEM((S + PADR, tv), jnp.float32),    # zero-padded buffer for causal conv
                pltpu.VMEM((S, 1), jnp.float32),            # running max (LSE)
                pltpu.VMEM((S, 1), jnp.float32),            # running sum-exp
                pltpu.VMEM((S, 1), jnp.float32),            # target logit
                pltpu.VMEM((S, 1), jnp.float32),            # weighted BCE row sum
            ],
        ),
        compiler_params=pltpu.CompilerParams(
            dimension_semantics=("parallel", "arbitrary")),
    )(windows, dup_tok, emb, g_norm, g_ctx, w_lm, w_ctx)


# ----------------------------------------------------------------------------
# Forward (training branch: y is not None, y_context is None)
# ----------------------------------------------------------------------------
def transformer_context_forward(x, y, params, *, tv=128):
    B, S = x.shape
    V = params["w_lm"].shape[1]
    K = K_CTX

    # Backbone stub (see TODO(synk) above): last_hidden_state = embedding[x].
    emb = params["tok_emb"][x]                                          # (B, S, D) f32

    # Raw future-context windows: windows[b, s, k] = y[b, s + k].  Only these
    # small (B, S, K) int32 arrays go to HBM; BCE one-hot targets/weights are
    # rebuilt inside the kernel per vocab tile.
    idx = jnp.arange(S)[:, None] + jnp.arange(K)[None, :]
    windows = y[:, idx].astype(jnp.int32)                               # (B, S, K)

    # Duplicate-token sentinels: window token kept iff it also occurs EARLIER in
    # the same window (i.e. that (b,s,token) has count > 1); -2 otherwise.
    eq = windows[..., :, None] == windows[..., None, :]                 # (B,S,K,K) [k, k']
    earlier = jnp.arange(K)[None, :] < jnp.arange(K)[:, None]           # k' < k
    dup_tok = jnp.where(jnp.any(eq & earlier, axis=-1), windows, -2).astype(jnp.int32)

    logits, stats = fused_head_and_losses(
        windows, dup_tok, emb, params["g_norm"], params["g_ctx"],
        params["w_lm"], params["w_ctx"], params["exp_decay"], tv=tv)

    ce_rows = stats[:, :, 0]
    valid_rows = stats[:, :, 1]
    bce_rows = stats[:, :, 2]
    loss = jnp.sum(ce_rows) / jnp.maximum(jnp.sum(valid_rows), 1.0)     # CE mean (ignore_index=-1)
    context_loss = jnp.sum(bce_rows) / float(B * S * V)                 # BCE mean over elements
    return {"logits": logits, "loss": loss, "context_loss": context_loss}


# ----------------------------------------------------------------------------
# Pure-JAX reference (for correctness check; mirrors the kernel's bf16 matmuls)
# ----------------------------------------------------------------------------
def reference_forward(x, y, params):
    emb = params["tok_emb"][x]
    inv1 = jax.lax.rsqrt(jnp.mean(emb * emb, -1, keepdims=True) + EPS)
    hn = emb * inv1 * params["g_norm"][0]
    inv2 = jax.lax.rsqrt(jnp.mean(hn * hn, -1, keepdims=True) + EPS)
    hc = hn * inv2 * params["g_ctx"][0]
    logits0 = jnp.dot(hn.astype(jnp.bfloat16), params["w_lm"],
                      preferred_element_type=jnp.float32)
    c = jnp.dot(hc.astype(jnp.bfloat16), params["w_ctx"],
                preferred_element_type=jnp.float32)
    ctx = jnp.einsum("ts,bsv->btv", params["toeplitz"], c,
                     precision=jax.lax.Precision.HIGHEST)
    logits = logits0 + ctx

    B, S = x.shape
    V = params["w_lm"].shape[1]
    tgt = y[:, :S]
    lse = jax.scipy.special.logsumexp(logits, axis=-1)
    tgt_logit = jnp.take_along_axis(logits, tgt[..., None], axis=-1)[..., 0]
    valid = (tgt != -1).astype(jnp.float32)
    loss = jnp.sum((lse - tgt_logit) * valid) / jnp.maximum(jnp.sum(valid), 1.0)

    idx = jnp.arange(S)[:, None] + jnp.arange(K_CTX)[None, :]
    counts = jax.nn.one_hot(y[:, idx], V).sum(-2)
    w = 1.0 + 0.5 * jnp.any(counts > 1, axis=0).astype(jnp.float32)
    t = (counts > 0).astype(jnp.float32)
    bce = jnp.maximum(c, 0.0) - c * t + jnp.log1p(jnp.exp(-jnp.abs(c)))
    context_loss = jnp.mean(w * bce)
    return {"logits": logits, "loss": loss, "context_loss": context_loss}


if __name__ == "__main__":
    B, S, D, V = 2, 16, 32, 256   # batch, seq, model_dim, vocab_size

    key = jax.random.PRNGKey(0)
    k1, k2, k3, k4, k5 = jax.random.split(key, 5)

    tok_emb = jax.random.normal(k1, (V, D), jnp.float32)
    g_norm = 1.0 + 0.1 * jax.random.normal(k2, (1, D), jnp.float32)
    w_lm = (0.05 * jax.random.normal(k3, (D, V), jnp.float32)).astype(jnp.bfloat16)
    # __init__ copies lm_head weights into the context head:
    g_ctx = g_norm
    w_ctx = w_lm

    # exp_decay buffer (non-learned) and its causal banded-Toeplitz form
    # (the Toeplitz matrix is only used by the pure-JAX reference).
    d = np.exp(-0.5 * np.arange(K_CTX)[::-1].astype(np.float32))
    d = (d / d.sum()).astype(np.float32)
    diff = np.arange(S)[:, None] - np.arange(S)[None, :]
    T = np.where((diff >= 0) & (diff < K_CTX),
                 d[np.clip(K_CTX - 1 - diff, 0, K_CTX - 1)],
                 0.0).astype(np.float32)

    params = dict(tok_emb=tok_emb, g_norm=g_norm, g_ctx=g_ctx,
                  w_lm=w_lm, w_ctx=w_ctx, exp_decay=d, toeplitz=jnp.asarray(T))

    x = jax.random.randint(k4, (B, S), 0, V, jnp.int32)
    # y carries the future-context window: shape (B, S + K - 1)
    y = jax.random.randint(k5, (B, S + K_CTX - 1), 0, V, jnp.int32)

    out = transformer_context_forward(x, y, params)
    out = jax.tree_util.tree_map(jax.block_until_ready, out)

    ref = reference_forward(x, y, params)
    np.testing.assert_allclose(np.asarray(out["logits"]), np.asarray(ref["logits"]),
                               rtol=2e-3, atol=2e-3)
    np.testing.assert_allclose(float(out["loss"]), float(ref["loss"]),
                               rtol=2e-3, atol=2e-3)
    np.testing.assert_allclose(float(out["context_loss"]), float(ref["context_loss"]),
                               rtol=2e-3, atol=2e-3)

    print("KERNEL_OK")
</pallas_src>

<mosaic_0001>
module attributes {stable_mosaic.version = 11 : i64} {
  func.func @kernel(%arg0: i32, %arg1: i32, %arg2: memref<1x16x16xi32, #tpu.memory_space<vmem>>, %arg3: memref<2x16x16xi32, #tpu.memory_space<vmem>>, %arg4: memref<1x16x32xf32, #tpu.memory_space<vmem>>, %arg5: memref<1x32xf32, #tpu.memory_space<vmem>>, %arg6: memref<1x32xf32, #tpu.memory_space<vmem>>, %arg7: memref<32x128xbf16, #tpu.memory_space<vmem>>, %arg8: memref<32x128xbf16, #tpu.memory_space<vmem>>, %arg9: memref<1x16x128xf32, #tpu.memory_space<vmem>>, %arg10: memref<1x16x128xf32, #tpu.memory_space<vmem>>, %arg11: memref<16x32xbf16, #tpu.memory_space<vmem>>, %arg12: memref<16x32xbf16, #tpu.memory_space<vmem>>, %arg13: memref<32x128xf32, #tpu.memory_space<vmem>>, %arg14: memref<16x1xf32, #tpu.memory_space<vmem>>, %arg15: memref<16x1xf32, #tpu.memory_space<vmem>>, %arg16: memref<16x1xf32, #tpu.memory_space<vmem>>, %arg17: memref<16x1xf32, #tpu.memory_space<vmem>>) attributes {dimension_semantics = [#tpu.dimension_semantics<parallel>, #tpu.dimension_semantics<arbitrary>], iteration_bounds = array<i64: 2, 2>, scalar_prefetch = 0 : i64, scratch_operands = 7 : i64, tpu.core_type = #tpu.core_type<tc>, window_params = [{transform_indices = @transform_0, window_bounds = array<i64: 1, 16, 16>}, {pipeline_mode = #tpu.pipeline_mode<synchronous>, transform_indices = @transform_1, window_bounds = array<i64: 2, 16, 16>}, {transform_indices = @transform_2, window_bounds = array<i64: 1, 16, 32>}, {pipeline_mode = #tpu.pipeline_mode<synchronous>, transform_indices = @transform_3, window_bounds = array<i64: 1, 32>}, {pipeline_mode = #tpu.pipeline_mode<synchronous>, transform_indices = @transform_4, window_bounds = array<i64: 1, 32>}, {transform_indices = @transform_5, window_bounds = array<i64: 32, 128>}, {transform_indices = @transform_6, window_bounds = array<i64: 32, 128>}, {transform_indices = @transform_7, window_bounds = array<i64: 1, 16, 128>}, {transform_indices = @transform_8, window_bounds = array<i64: 1, 16, 128>}]} {
    %c0_i32 = arith.constant 0 : i32
    %0 = arith.cmpi eq, %arg1, %c0_i32 : i32
    %1 = arith.extui %0 : i1 to i32
    %c0_i32_0 = arith.constant 0 : i32
    %2 = arith.cmpi ne, %1, %c0_i32_0 : i32
    scf.if %2 {
      %c0_65 = arith.constant 0 : index
      %c0_66 = arith.constant 0 : index
      %c0_67 = arith.constant 0 : index
      %287 = vector.load %arg4[%c0_65, %c0_66, %c0_67] : memref<1x16x32xf32, #tpu.memory_space<vmem>>, vector<1x16x32xf32>
      %288 = vector.shape_cast %287 : vector<1x16x32xf32> to vector<16x32xf32>
      %289 = arith.mulf %288, %288 : vector<16x32xf32>
      %cst_68 = arith.constant dense<0.000000e+00> : vector<16xf32>
      %290 = vector.multi_reduction <add>, %289, %cst_68 [1] : vector<16x32xf32> to vector<16xf32>
      %291 = vector.shape_cast %290 : vector<16xf32> to vector<16x1xf32>
      %cst_69 = arith.constant 3.200000e+01 : f32
      %292 = vector.broadcast %cst_69 : f32 to vector<16x1xf32>
      %293 = arith.divf %291, %292 : vector<16x1xf32>
      %cst_70 = arith.constant 9.99999997E-7 : f32
      %294 = vector.broadcast %cst_70 : f32 to vector<16x1xf32>
      %295 = arith.addf %293, %294 : vector<16x1xf32>
      %296 = math.rsqrt %295 : vector<16x1xf32>
      %297 = vector.broadcast %296 : vector<16x1xf32> to vector<16x32xf32>
      %298 = arith.mulf %288, %297 : vector<16x32xf32>
      %c0_71 = arith.constant 0 : index
      %c0_72 = arith.constant 0 : index
      %299 = vector.load %arg5[%c0_71, %c0_72] : memref<1x32xf32, #tpu.memory_space<vmem>>, vector<1x32xf32>
      %300 = vector.broadcast %299 : vector<1x32xf32> to vector<16x32xf32>
      %301 = arith.mulf %298, %300 : vector<16x32xf32>
      %302 = arith.mulf %301, %301 : vector<16x32xf32>
      %cst_73 = arith.constant dense<0.000000e+00> : vector<16xf32>
      %303 = vector.multi_reduction <add>, %302, %cst_73 [1] : vector<16x32xf32> to vector<16xf32>
      %304 = vector.shape_cast %303 : vector<16xf32> to vector<16x1xf32>
      %cst_74 = arith.constant 3.200000e+01 : f32
      %305 = vector.broadcast %cst_74 : f32 to vector<16x1xf32>
      %306 = arith.divf %304, %305 : vector<16x1xf32>
      %cst_75 = arith.constant 9.99999997E-7 : f32
      %307 = vector.broadcast %cst_75 : f32 to vector<16x1xf32>
      %308 = arith.addf %306, %307 : vector<16x1xf32>
      %309 = math.rsqrt %308 : vector<16x1xf32>
      %310 = vector.broadcast %309 : vector<16x1xf32> to vector<16x32xf32>
      %311 = arith.mulf %301, %310 : vector<16x32xf32>
      %c0_76 = arith.constant 0 : index
      %c0_77 = arith.constant 0 : index
      %312 = vector.load %arg6[%c0_76, %c0_77] : memref<1x32xf32, #tpu.memory_space<vmem>>, vector<1x32xf32>
      %313 = vector.broadcast %312 : vector<1x32xf32> to vector<16x32xf32>
      %314 = arith.mulf %311, %313 : vector<16x32xf32>
      %315 = arith.truncf %301 : vector<16x32xf32> to vector<16x32xbf16>
      %c0_78 = arith.constant 0 : index
      %c0_79 = arith.constant 0 : index
      %316 = vector.load %arg11[%c0_78, %c0_79] : memref<16x32xbf16, #tpu.memory_space<vmem>>, vector<16x32xbf16>
      tpu.vector_store %arg11[%c0_78, %c0_79], %315 {strides = array<i32>} : memref<16x32xbf16, #tpu.memory_space<vmem>>, vector<16x32xbf16>,
      %317 = arith.truncf %314 : vector<16x32xf32> to vector<16x32xbf16>
      %c0_80 = arith.constant 0 : index
      %c0_81 = arith.constant 0 : index
      %318 = vector.load %arg12[%c0_80, %c0_81] : memref<16x32xbf16, #tpu.memory_space<vmem>>, vector<16x32xbf16>
      tpu.vector_store %arg12[%c0_80, %c0_81], %317 {strides = array<i32>} : memref<16x32xbf16, #tpu.memory_space<vmem>>, vector<16x32xbf16>,
      %cst_82 = arith.constant 0.000000e+00 : f32
      %319 = vector.broadcast %cst_82 : f32 to vector<16x128xf32>
      %c0_83 = arith.constant 0 : index
      %c0_84 = arith.constant 0 : index
      %320 = vector.load %arg13[%c0_83, %c0_84] : memref<32x128xf32, #tpu.memory_space<vmem>>, vector<16x128xf32>
      tpu.vector_store %arg13[%c0_83, %c0_84], %319 {strides = array<i32>} : memref<32x128xf32, #tpu.memory_space<vmem>>, vector<16x128xf32>,
      %cst_85 = arith.constant 0xFF800000 : f32
      %321 = vector.broadcast %cst_85 : f32 to vector<16x1xf32>
      %c0_86 = arith.constant 0 : index
      %c0_87 = arith.constant 0 : index
      %322 = vector.load %arg14[%c0_86, %c0_87] : memref<16x1xf32, #tpu.memory_space<vmem>>, vector<16x1xf32>
      tpu.vector_store %arg14[%c0_86, %c0_87], %321 {strides = array<i32>} : memref<16x1xf32, #tpu.memory_space<vmem>>, vector<16x1xf32>,
      %cst_88 = arith.constant 0.000000e+00 : f32
      %323 = vector.broadcast %cst_88 : f32 to vector<16x1xf32>
      %c0_89 = arith.constant 0 : index
      %c0_90 = arith.constant 0 : index
      %324 = vector.load %arg15[%c0_89, %c0_90] : memref<16x1xf32, #tpu.memory_space<vmem>>, vector<16x1xf32>
      tpu.vector_store %arg15[%c0_89, %c0_90], %323 {strides = array<i32>} : memref<16x1xf32, #tpu.memory_space<vmem>>, vector<16x1xf32>,
      %cst_91 = arith.constant 0.000000e+00 : f32
      %325 = vector.broadcast %cst_91 : f32 to vector<16x1xf32>
      %c0_92 = arith.constant 0 : index
      %c0_93 = arith.constant 0 : index
      %326 = vector.load %arg16[%c0_92, %c0_93] : memref<16x1xf32, #tpu.memory_space<vmem>>, vector<16x1xf32>
      tpu.vector_store %arg16[%c0_92, %c0_93], %325 {strides = array<i32>} : memref<16x1xf32, #tpu.memory_space<vmem>>, vector<16x1xf32>,
      %cst_94 = arith.constant 0.000000e+00 : f32
      %327 = vector.broadcast %cst_94 : f32 to vector<16x1xf32>
      %c0_95 = arith.constant 0 : index
      %c0_96 = arith.constant 0 : index
      %328 = vector.load %arg17[%c0_95, %c0_96] : memref<16x1xf32, #tpu.memory_space<vmem>>, vector<16x1xf32>
      tpu.vector_store %arg17[%c0_95, %c0_96], %327 {strides = array<i32>} : memref<16x1xf32, #tpu.memory_space<vmem>>, vector<16x1xf32>,
    } else {
    }
    %c0 = arith.constant 0 : index
    %c0_1 = arith.constant 0 : index
    %3 = vector.load %arg11[%c0, %c0_1] : memref<16x32xbf16, #tpu.memory_space<vmem>>, vector<16x32xbf16>
    %c0_2 = arith.constant 0 : index
    %c0_3 = arith.constant 0 : index
    %4 = vector.load %arg7[%c0_2, %c0_3] : memref<32x128xbf16, #tpu.memory_space<vmem>>, vector<32x128xbf16>
    %cst = arith.constant dense<0.000000e+00> : vector<16x128xf32>
    %5 = tpu.matmul %3, %4, %cst {dimension_numbers = #tpu.dot_dimension_numbers<[1], [0], [0], [1], [0, 0, 1, 1], [], []>} : vector<16x32xbf16>, vector<32x128xbf16>, vector<16x128xf32> -> vector<16x128xf32>
    %c0_4 = arith.constant 0 : index
    %c0_5 = arith.constant 0 : index
    %6 = vector.load %arg12[%c0_4, %c0_5] : memref<16x32xbf16, #tpu.memory_space<vmem>>, vector<16x32xbf16>
    %c0_6 = arith.constant 0 : index
    %c0_7 = arith.constant 0 : index
    %7 = vector.load %arg8[%c0_6, %c0_7] : memref<32x128xbf16, #tpu.memory_space<vmem>>, vector<32x128xbf16>
    %cst_8 = arith.constant dense<0.000000e+00> : vector<16x128xf32>
    %8 = tpu.matmul %6, %7, %cst_8 {dimension_numbers = #tpu.dot_dimension_numbers<[1], [0], [0], [1], [0, 0, 1, 1], [], []>} : vector<16x32xbf16>, vector<32x128xbf16>, vector<16x128xf32> -> vector<16x128xf32>
    %c16 = arith.constant 16 : index
    %c0_9 = arith.constant 0 : index
    %9 = vector.load %arg13[%c16, %c0_9] : memref<32x128xf32, #tpu.memory_space<vmem>>, vector<16x128xf32>
    tpu.vector_store %arg13[%c16, %c0_9], %8 {strides = array<i32>} : memref<32x128xf32, #tpu.memory_space<vmem>>, vector<16x128xf32>,
    %c15 = arith.constant 15 : index
    %c0_10 = arith.constant 0 : index
    %10 = vector.load %arg13[%c15, %c0_10] : memref<32x128xf32, #tpu.memory_space<vmem>>, vector<16x128xf32>
    %cst_11 = arith.constant 0.606530725 : f32
    %11 = vector.broadcast %cst_11 : f32 to vector<16x128xf32>
    %12 = arith.mulf %11, %10 : vector<16x128xf32>
    %13 = arith.addf %8, %12 : vector<16x128xf32>
    %c16_12 = arith.constant 16 : index
    %c0_13 = arith.constant 0 : index
    %14 = vector.load %arg13[%c16_12, %c0_13] : memref<32x128xf32, #tpu.memory_space<vmem>>, vector<16x128xf32>
    tpu.vector_store %arg13[%c16_12, %c0_13], %13 {strides = array<i32>} : memref<32x128xf32, #tpu.memory_space<vmem>>, vector<16x128xf32>,
    %c14 = arith.constant 14 : index
    %c0_14 = arith.constant 0 : index
    %15 = vector.load %arg13[%c14, %c0_14] : memref<32x128xf32, #tpu.memory_space<vmem>>, vector<16x128xf32>
    %cst_15 = arith.constant 0.36787951 : f32
    %16 = vector.broadcast %cst_15 : f32 to vector<16x128xf32>
    %17 = arith.mulf %16, %15 : vector<16x128xf32>
    %18 = arith.addf %13, %17 : vector<16x128xf32>
    %c16_16 = arith.constant 16 : index
    %c0_17 = arith.constant 0 : index
    %19 = vector.load %arg13[%c16_16, %c0_17] : memref<32x128xf32, #tpu.memory_space<vmem>>, vector<16x128xf32>
    tpu.vector_store %arg13[%c16_16, %c0_17], %18 {strides = array<i32>} : memref<32x128xf32, #tpu.memory_space<vmem>>, vector<16x128xf32>,
    %c12 = arith.constant 12 : index
    %c0_18 = arith.constant 0 : index
    %20 = vector.load %arg13[%c12, %c0_18] : memref<32x128xf32, #tpu.memory_space<vmem>>, vector<16x128xf32>
    %cst_19 = arith.constant 0.135335326 : f32
    %21 = vector.broadcast %cst_19 : f32 to vector<16x128xf32>
    %22 = arith.mulf %21, %20 : vector<16x128xf32>
    %23 = arith.addf %18, %22 : vector<16x128xf32>
    %c16_20 = arith.constant 16 : index
    %c0_21 = arith.constant 0 : index
    %24 = vector.load %arg13[%c16_20, %c0_21] : memref<32x128xf32, #tpu.memory_space<vmem>>, vector<16x128xf32>
    tpu.vector_store %arg13[%c16_20, %c0_21], %23 {strides = array<i32>} : memref<32x128xf32, #tpu.memory_space<vmem>>, vector<16x128xf32>,
    %c8 = arith.constant 8 : index
    %c0_22 = arith.constant 0 : index
    %25 = vector.load %arg13[%c8, %c0_22] : memref<32x128xf32, #tpu.memory_space<vmem>>, vector<16x128xf32>
    %cst_23 = arith.constant 0.0183156505 : f32
    %26 = vector.broadcast %cst_23 : f32 to vector<16x128xf32>
    %27 = arith.mulf %26, %25 : vector<16x128xf32>
    %28 = arith.addf %23, %27 : vector<16x128xf32>
    %cst_24 = arith.constant 0.393601358 : f32
    %29 = vector.broadcast %cst_24 : f32 to vector<16x128xf32>
    %30 = arith.mulf %29, %28 : vector<16x128xf32>
    %31 = arith.addf %5, %30 : vector<16x128xf32>
    %c0_25 = arith.constant 0 : index
    %c0_26 = arith.constant 0 : index
    %c0_27 = arith.constant 0 : index
    %32 = vector.load %arg9[%c0_25, %c0_26, %c0_27] : memref<1x16x128xf32, #tpu.memory_space<vmem>>, vector<1x16x128xf32>
    %33 = vector.shape_cast %32 : vector<1x16x128xf32> to vector<16x128xf32>
    %34 = vector.shape_cast %31 : vector<16x128xf32> to vector<1x16x128xf32>
    tpu.vector_store %arg9[%c0_25, %c0_26, %c0_27], %34 {strides = array<i32>} : memref<1x16x128xf32, #tpu.memory_space<vmem>>, vector<1x16x128xf32>,
    %c128_i32 = arith.constant 128 : i32
    %35 = arith.muli %arg1, %c128_i32 : i32
    %36 = tpu.iota {dimensions = array<i32: 1>} : vector<16x128xi32>
    %37 = vector.broadcast %35 : i32 to vector<16x128xi32>
    %38 = arith.addi %37, %36 : vector<16x128xi32>
    %c0_28 = arith.constant 0 : index
    %c0_29 = arith.constant 0 : index
    %c0_30 = arith.constant 0 : index
    %39 = vector.load %arg2[%c0_28, %c0_29, %c0_30] : memref<1x16x16xi32, #tpu.memory_space<vmem>>, vector<1x16x16xi32>
    %40 = vector.shape_cast %39 : vector<1x16x16xi32> to vector<16x16xi32>
    %41 = vector.extract_strided_slice %40 {offsets = [0, 0], sizes = [16, 1], strides = [1, 1]} : vector<16x16xi32> to vector<16x1xi32>
    %42 = vector.extract_strided_slice %40 {offsets = [0, 0], sizes = [16, 1], strides = [1, 1]} : vector<16x16xi32> to vector<16x1xi32>
    %43 = vector.broadcast %42 : vector<16x1xi32> to vector<16x128xi32>
    %44 = arith.cmpi eq, %43, %38 : vector<16x128xi32>
    %45 = vector.extract_strided_slice %40 {offsets = [0, 1], sizes = [16, 1], strides = [1, 1]} : vector<16x16xi32> to vector<16x1xi32>
    %46 = vector.broadcast %45 : vector<16x1xi32> to vector<16x128xi32>
    %47 = arith.cmpi eq, %46, %38 : vector<16x128xi32>
    %48 = arith.ori %44, %47 : vector<16x128xi1>
    %49 = vector.extract_strided_slice %40 {offsets = [0, 2], sizes = [16, 1], strides = [1, 1]} : vector<16x16xi32> to vector<16x1xi32>
    %50 = vector.broadcast %49 : vector<16x1xi32> to vector<16x128xi32>
    %51 = arith.cmpi eq, %50, %38 : vector<16x128xi32>
    %52 = arith.ori %48, %51 : vector<16x128xi1>
    %53 = vector.extract_strided_slice %40 {offsets = [0, 3], sizes = [16, 1], strides = [1, 1]} : vector<16x16xi32> to vector<16x1xi32>
    %54 = vector.broadcast %53 : vector<16x1xi32> to vector<16x128xi32>
    %55 = arith.cmpi eq, %54, %38 : vector<16x128xi32>
    %56 = arith.ori %52, %55 : vector<16x128xi1>
    %57 = vector.extract_strided_slice %40 {offsets = [0, 4], sizes = [16, 1], strides = [1, 1]} : vector<16x16xi32> to vector<16x1xi32>
    %58 = vector.broadcast %57 : vector<16x1xi32> to vector<16x128xi32>
    %59 = arith.cmpi eq, %58, %38 : vector<16x128xi32>
    %60 = arith.ori %56, %59 : vector<16x128xi1>
    %61 = vector.extract_strided_slice %40 {offsets = [0, 5], sizes = [16, 1], strides = [1, 1]} : vector<16x16xi32> to vector<16x1xi32>
    %62 = vector.broadcast %61 : vector<16x1xi32> to vector<16x128xi32>
    %63 = arith.cmpi eq, %62, %38 : vector<16x128xi32>
    %64 = arith.ori %60, %63 : vector<16x128xi1>
    %65 = vector.extract_strided_slice %40 {offsets = [0, 6], sizes = [16, 1], strides = [1, 1]} : vector<16x16xi32> to vector<16x1xi32>
    %66 = vector.broadcast %65 : vector<16x1xi32> to vector<16x128xi32>
    %67 = arith.cmpi eq, %66, %38 : vector<16x128xi32>
    %68 = arith.ori %64, %67 : vector<16x128xi1>
    %69 = vector.extract_strided_slice %40 {offsets = [0, 7], sizes = [16, 1], strides = [1, 1]} : vector<16x16xi32> to vector<16x1xi32>
    %70 = vector.broadcast %69 : vector<16x1xi32> to vector<16x128xi32>
    %71 = arith.cmpi eq, %70, %38 : vector<16x128xi32>
    %72 = arith.ori %68, %71 : vector<16x128xi1>
    %73 = vector.extract_strided_slice %40 {offsets = [0, 8], sizes = [16, 1], strides = [1, 1]} : vector<16x16xi32> to vector<16x1xi32>
    %74 = vector.broadcast %73 : vector<16x1xi32> to vector<16x128xi32>
    %75 = arith.cmpi eq, %74, %38 : vector<16x128xi32>
    %76 = arith.ori %72, %75 : vector<16x128xi1>
    %77 = vector.extract_strided_slice %40 {offsets = [0, 9], sizes = [16, 1], strides = [1, 1]} : vector<16x16xi32> to vector<16x1xi32>
    %78 = vector.broadcast %77 : vector<16x1xi32> to vector<16x128xi32>
    %79 = arith.cmpi eq, %78, %38 : vector<16x128xi32>
    %80 = arith.ori %76, %79 : vector<16x128xi1>
    %81 = vector.extract_strided_slice %40 {offsets = [0, 10], sizes = [16, 1], strides = [1, 1]} : vector<16x16xi32> to vector<16x1xi32>
    %82 = vector.broadcast %81 : vector<16x1xi32> to vector<16x128xi32>
    %83 = arith.cmpi eq, %82, %38 : vector<16x128xi32>
    %84 = arith.ori %80, %83 : vector<16x128xi1>
    %85 = vector.extract_strided_slice %40 {offsets = [0, 11], sizes = [16, 1], strides = [1, 1]} : vector<16x16xi32> to vector<16x1xi32>
    %86 = vector.broadcast %85 : vector<16x1xi32> to vector<16x128xi32>
    %87 = arith.cmpi eq, %86, %38 : vector<16x128xi32>
    %88 = arith.ori %84, %87 : vector<16x128xi1>
    %89 = vector.extract_strided_slice %40 {offsets = [0, 12], sizes = [16, 1], strides = [1, 1]} : vector<16x16xi32> to vector<16x1xi32>
    %90 = vector.broadcast %89 : vector<16x1xi32> to vector<16x128xi32>
    %91 = arith.cmpi eq, %90, %38 : vector<16x128xi32>
    %92 = arith.ori %88, %91 : vector<16x128xi1>
    %93 = vector.extract_strided_slice %40 {offsets = [0, 13], sizes = [16, 1], strides = [1, 1]} : vector<16x16xi32> to vector<16x1xi32>
    %94 = vector.broadcast %93 : vector<16x1xi32> to vector<16x128xi32>
    %95 = arith.cmpi eq, %94, %38 : vector<16x128xi32>
    %96 = arith.ori %92, %95 : vector<16x128xi1>
    %97 = vector.extract_strided_slice %40 {offsets = [0, 14], sizes = [16, 1], strides = [1, 1]} : vector<16x16xi32> to vector<16x1xi32>
    %98 = vector.broadcast %97 : vector<16x1xi32> to vector<16x128xi32>
    %99 = arith.cmpi eq, %98, %38 : vector<16x128xi32>
    %100 = arith.ori %96, %99 : vector<16x128xi1>
    %101 = vector.extract_strided_slice %40 {offsets = [0, 15], sizes = [16, 1], strides = [1, 1]} : vector<16x16xi32> to vector<16x1xi32>
    %102 = vector.broadcast %101 : vector<16x1xi32> to vector<16x128xi32>
    %103 = arith.cmpi eq, %102, %38 : vector<16x128xi32>
    %104 = arith.ori %100, %103 : vector<16x128xi1>
    %c0_31 = arith.constant 0 : index
    %c0_32 = arith.constant 0 : index
    %c0_33 = arith.constant 0 : index
    %105 = vector.load %arg3[%c0_31, %c0_32, %c0_33] : memref<2x16x16xi32, #tpu.memory_space<vmem>>, vector<1x16x16xi32>
    %106 = vector.shape_cast %105 : vector<1x16x16xi32> to vector<16x16xi32>
    %107 = vector.extract_strided_slice %106 {offsets = [0, 0], sizes = [16, 1], strides = [1, 1]} : vector<16x16xi32> to vector<16x1xi32>
    %108 = vector.broadcast %107 : vector<16x1xi32> to vector<16x128xi32>
    %109 = arith.cmpi eq, %108, %38 : vector<16x128xi32>
    %c0_34 = arith.constant 0 : index
    %c0_35 = arith.constant 0 : index
    %c0_36 = arith.constant 0 : index
    %110 = vector.load %arg3[%c0_34, %c0_35, %c0_36] : memref<2x16x16xi32, #tpu.memory_space<vmem>>, vector<1x16x16xi32>
    %111 = vector.shape_cast %110 : vector<1x16x16xi32> to vector<16x16xi32>
    %112 = vector.extract_strided_slice %111 {offsets = [0, 1], sizes = [16, 1], strides = [1, 1]} : vector<16x16xi32> to vector<16x1xi32>
    %113 = vector.broadcast %112 : vector<16x1xi32> to vector<16x128xi32>
    %114 = arith.cmpi eq, %113, %38 : vector<16x128xi32>
    %115 = arith.ori %109, %114 : vector<16x128xi1>
    %116 = vector.extract_strided_slice %111 {offsets = [0, 2], sizes = [16, 1], strides = [1, 1]} : vector<16x16xi32> to vector<16x1xi32>
    %117 = vector.broadcast %116 : vector<16x1xi32> to vector<16x128xi32>
    %118 = arith.cmpi eq, %117, %38 : vector<16x128xi32>
    %119 = arith.ori %115, %118 : vector<16x128xi1>
    %120 = vector.extract_strided_slice %111 {offsets = [0, 3], sizes = [16, 1], strides = [1, 1]} : vector<16x16xi32> to vector<16x1xi32>
    %121 = vector.broadcast %120 : vector<16x1xi32> to vector<16x128xi32>
    %122 = arith.cmpi eq, %121, %38 : vector<16x128xi32>
    %123 = arith.ori %119, %122 : vector<16x128xi1>
    %124 = vector.extract_strided_slice %111 {offsets = [0, 4], sizes = [16, 1], strides = [1, 1]} : vector<16x16xi32> to vector<16x1xi32>
    %125 = vector.broadcast %124 : vector<16x1xi32> to vector<16x128xi32>
    %126 = arith.cmpi eq, %125, %38 : vector<16x128xi32>
    %127 = arith.ori %123, %126 : vector<16x128xi1>
    %128 = vector.extract_strided_slice %111 {offsets = [0, 5], sizes = [16, 1], strides = [1, 1]} : vector<16x16xi32> to vector<16x1xi32>
    %129 = vector.broadcast %128 : vector<16x1xi32> to vector<16x128xi32>
    %130 = arith.cmpi eq, %129, %38 : vector<16x128xi32>
    %131 = arith.ori %127, %130 : vector<16x128xi1>
    %132 = vector.extract_strided_slice %111 {offsets = [0, 6], sizes = [16, 1], strides = [1, 1]} : vector<16x16xi32> to vector<16x1xi32>
    %133 = vector.broadcast %132 : vector<16x1xi32> to vector<16x128xi32>
    %134 = arith.cmpi eq, %133, %38 : vector<16x128xi32>
    %135 = arith.ori %131, %134 : vector<16x128xi1>
    %136 = vector.extract_strided_slice %111 {offsets = [0, 7], sizes = [16, 1], strides = [1, 1]} : vector<16x16xi32> to vector<16x1xi32>
    %137 = vector.broadcast %136 : vector<16x1xi32> to vector<16x128xi32>
    %138 = arith.cmpi eq, %137, %38 : vector<16x128xi32>
    %139 = arith.ori %135, %138 : vector<16x128xi1>
    %140 = vector.extract_strided_slice %111 {offsets = [0, 8], sizes = [16, 1], strides = [1, 1]} : vector<16x16xi32> to vector<16x1xi32>
    %141 = vector.broadcast %140 : vector<16x1xi32> to vector<16x128xi32>
    %142 = arith.cmpi eq, %141, %38 : vector<16x128xi32>
    %143 = arith.ori %139, %142 : vector<16x128xi1>
    %144 = vector.extract_strided_slice %111 {offsets = [0, 9], sizes = [16, 1], strides = [1, 1]} : vector<16x16xi32> to vector<16x1xi32>
    %145 = vector.broadcast %144 : vector<16x1xi32> to vector<16x128xi32>
    %146 = arith.cmpi eq, %145, %38 : vector<16x128xi32>
    %147 = arith.ori %143, %146 : vector<16x128xi1>
    %148 = vector.extract_strided_slice %111 {offsets = [0, 10], sizes = [16, 1], strides = [1, 1]} : vector<16x16xi32> to vector<16x1xi32>
    %149 = vector.broadcast %148 : vector<16x1xi32> to vector<16x128xi32>
    %150 = arith.cmpi eq, %149, %38 : vector<16x128xi32>
    %151 = arith.ori %147, %150 : vector<16x128xi1>
    %152 = vector.extract_strided_slice %111 {offsets = [0, 11], sizes = [16, 1], strides = [1, 1]} : vector<16x16xi32> to vector<16x1xi32>
    %153 = vector.broadcast %152 : vector<16x1xi32> to vector<16x128xi32>
    %154 = arith.cmpi eq, %153, %38 : vector<16x128xi32>
    %155 = arith.ori %151, %154 : vector<16x128xi1>
    %156 = vector.extract_strided_slice %111 {offsets = [0, 12], sizes = [16, 1], strides = [1, 1]} : vector<16x16xi32> to vector<16x1xi32>
    %157 = vector.broadcast %156 : vector<16x1xi32> to vector<16x128xi32>
    %158 = arith.cmpi eq, %157, %38 : vector<16x128xi32>
    %159 = arith.ori %155, %158 : vector<16x128xi1>
    %160 = vector.extract_strided_slice %111 {offsets = [0, 13], sizes = [16, 1], strides = [1, 1]} : vector<16x16xi32> to vector<16x1xi32>
    %161 = vector.broadcast %160 : vector<16x1xi32> to vector<16x128xi32>
    %162 = arith.cmpi eq, %161, %38 : vector<16x128xi32>
    %163 = arith.ori %159, %162 : vector<16x128xi1>
    %164 = vector.extract_strided_slice %111 {offsets = [0, 14], sizes = [16, 1], strides = [1, 1]} : vector<16x16xi32> to vector<16x1xi32>
    %165 = vector.broadcast %164 : vector<16x1xi32> to vector<16x128xi32>
    %166 = arith.cmpi eq, %165, %38 : vector<16x128xi32>
    %167 = arith.ori %163, %166 : vector<16x128xi1>
    %168 = vector.extract_strided_slice %111 {offsets = [0, 15], sizes = [16, 1], strides = [1, 1]} : vector<16x16xi32> to vector<16x1xi32>
    %169 = vector.broadcast %168 : vector<16x1xi32> to vector<16x128xi32>
    %170 = arith.cmpi eq, %169, %38 : vector<16x128xi32>
    %171 = arith.ori %167, %170 : vector<16x128xi1>
    %c1 = arith.constant 1 : index
    %c0_37 = arith.constant 0 : index
    %c0_38 = arith.constant 0 : index
    %172 = vector.load %arg3[%c1, %c0_37, %c0_38] : memref<2x16x16xi32, #tpu.memory_space<vmem>>, vector<1x16x16xi32>
    %173 = vector.shape_cast %172 : vector<1x16x16xi32> to vector<16x16xi32>
    %174 = vector.extract_strided_slice %173 {offsets = [0, 0], sizes = [16, 1], strides = [1, 1]} : vector<16x16xi32> to vector<16x1xi32>
    %175 = vector.broadcast %174 : vector<16x1xi32> to vector<16x128xi32>
    %176 = arith.cmpi eq, %175, %38 : vector<16x128xi32>
    %177 = arith.ori %171, %176 : vector<16x128xi1>
    %178 = vector.extract_strided_slice %173 {offsets = [0, 1], sizes = [16, 1], strides = [1, 1]} : vector<16x16xi32> to vector<16x1xi32>
    %179 = vector.broadcast %178 : vector<16x1xi32> to vector<16x128xi32>
    %180 = arith.cmpi eq, %179, %38 : vector<16x128xi32>
    %181 = arith.ori %177, %180 : vector<16x128xi1>
    %182 = vector.extract_strided_slice %173 {offsets = [0, 2], sizes = [16, 1], strides = [1, 1]} : vector<16x16xi32> to vector<16x1xi32>
    %183 = vector.broadcast %182 : vector<16x1xi32> to vector<16x128xi32>
    %184 = arith.cmpi eq, %183, %38 : vector<16x128xi32>
    %185 = arith.ori %181, %184 : vector<16x128xi1>
    %186 = vector.extract_strided_slice %173 {offsets = [0, 3], sizes = [16, 1], strides = [1, 1]} : vector<16x16xi32> to vector<16x1xi32>
    %187 = vector.broadcast %186 : vector<16x1xi32> to vector<16x128xi32>
    %188 = arith.cmpi eq, %187, %38 : vector<16x128xi32>
    %189 = arith.ori %185, %188 : vector<16x128xi1>
    %190 = vector.extract_strided_slice %173 {offsets = [0, 4], sizes = [16, 1], strides = [1, 1]} : vector<16x16xi32> to vector<16x1xi32>
    %191 = vector.broadcast %190 : vector<16x1xi32> to vector<16x128xi32>
    %192 = arith.cmpi eq, %191, %38 : vector<16x128xi32>
    %193 = arith.ori %189, %192 : vector<16x128xi1>
    %194 = vector.extract_strided_slice %173 {offsets = [0, 5], sizes = [16, 1], strides = [1, 1]} : vector<16x16xi32> to vector<16x1xi32>
    %195 = vector.broadcast %194 : vector<16x1xi32> to vector<16x128xi32>
    %196 = arith.cmpi eq, %195, %38 : vector<16x128xi32>
    %197 = arith.ori %193, %196 : vector<16x128xi1>
    %198 = vector.extract_strided_slice %173 {offsets = [0, 6], sizes = [16, 1], strides = [1, 1]} : vector<16x16xi32> to vector<16x1xi32>
    %199 = vector.broadcast %198 : vector<16x1xi32> to vector<16x128xi32>
    %200 = arith.cmpi eq, %199, %38 : vector<16x128xi32>
    %201 = arith.ori %197, %200 : vector<16x128xi1>
    %202 = vector.extract_strided_slice %173 {offsets = [0, 7], sizes = [16, 1], strides = [1, 1]} : vector<16x16xi32> to vector<16x1xi32>
    %203 = vector.broadcast %202 : vector<16x1xi32> to vector<16x128xi32>
    %204 = arith.cmpi eq, %203, %38 : vector<16x128xi32>
    %205 = arith.ori %201, %204 : vector<16x128xi1>
    %206 = vector.extract_strided_slice %173 {offsets = [0, 8], sizes = [16, 1], strides = [1, 1]} : vector<16x16xi32> to vector<16x1xi32>
    %207 = vector.broadcast %206 : vector<16x1xi32> to vector<16x128xi32>
    %208 = arith.cmpi eq, %207, %38 : vector<16x128xi32>
    %209 = arith.ori %205, %208 : vector<16x128xi1>
    %210 = vector.extract_strided_slice %173 {offsets = [0, 9], sizes = [16, 1], strides = [1, 1]} : vector<16x16xi32> to vector<16x1xi32>
    %211 = vector.broadcast %210 : vector<16x1xi32> to vector<16x128xi32>
    %212 = arith.cmpi eq, %211, %38 : vector<16x128xi32>
    %213 = arith.ori %209, %212 : vector<16x128xi1>
    %214 = vector.extract_strided_slice %173 {offsets = [0, 10], sizes = [16, 1], strides = [1, 1]} : vector<16x16xi32> to vector<16x1xi32>
    %215 = vector.broadcast %214 : vector<16x1xi32> to vector<16x128xi32>
    %216 = arith.cmpi eq, %215, %38 : vector<16x128xi32>
    %217 = arith.ori %213, %216 : vector<16x128xi1>
    %218 = vector.extract_strided_slice %173 {offsets = [0, 11], sizes = [16, 1], strides = [1, 1]} : vector<16x16xi32> to vector<16x1xi32>
    %219 = vector.broadcast %218 : vector<16x1xi32> to vector<16x128xi32>
    %220 = arith.cmpi eq, %219, %38 : vector<16x128xi32>
    %221 = arith.ori %217, %220 : vector<16x128xi1>
    %222 = vector.extract_strided_slice %173 {offsets = [0, 12], sizes = [16, 1], strides = [1, 1]} : vector<16x16xi32> to vector<16x1xi32>
    %223 = vector.broadcast %222 : vector<16x1xi32> to vector<16x128xi32>
    %224 = arith.cmpi eq, %223, %38 : vector<16x128xi32>
    %225 = arith.ori %221, %224 : vector<16x128xi1>
    %226 = vector.extract_strided_slice %173 {offsets = [0, 13], sizes = [16, 1], strides = [1, 1]} : vector<16x16xi32> to vector<16x1xi32>
    %227 = vector.broadcast %226 : vector<16x1xi32> to vector<16x128xi32>
    %228 = arith.cmpi eq, %227, %38 : vector<16x128xi32>
    %229 = arith.ori %225, %228 : vector<16x128xi1>
    %230 = vector.extract_strided_slice %173 {offsets = [0, 14], sizes = [16, 1], strides = [1, 1]} : vector<16x16xi32> to vector<16x1xi32>
    %231 = vector.broadcast %230 : vector<16x1xi32> to vector<16x128xi32>
    %232 = arith.cmpi eq, %231, %38 : vector<16x128xi32>
    %233 = arith.ori %229, %232 : vector<16x128xi1>
    %234 = vector.extract_strided_slice %173 {offsets = [0, 15], sizes = [16, 1], strides = [1, 1]} : vector<16x16xi32> to vector<16x1xi32>
    %235 = vector.broadcast %234 : vector<16x1xi32> to vector<16x128xi32>
    %236 = arith.cmpi eq, %235, %38 : vector<16x128xi32>
    %237 = arith.ori %233, %236 : vector<16x128xi1>
    %238 = arith.extui %104 : vector<16x128xi1> to vector<16x128xi32>
    %239 = arith.sitofp %238 : vector<16x128xi32> to vector<16x128xf32>
    %cst_39 = arith.constant 1.500000e+00 : f32
    %cst_40 = arith.constant 1.000000e+00 : f32
    %240 = vector.broadcast %cst_39 : f32 to vector<16x128xf32>
    %241 = vector.broadcast %cst_40 : f32 to vector<16x128xf32>
    %242 = arith.select %237, %240, %241 : vector<16x128xi1>, vector<16x128xf32>
    %cst_41 = arith.constant 0.000000e+00 : f32
    %243 = vector.broadcast %cst_41 : f32 to vector<16x128xf32>
    %244 = arith.maximumf %8, %243 : vector<16x128xf32>
    %245 = arith.mulf %8, %239 : vector<16x128xf32>
    %246 = arith.subf %244, %245 : vector<16x128xf32>
    %247 = math.absf %8 : vector<16x128xf32>
    %cst_42 = arith.constant 0.000000e+00 : f32
    %248 = vector.broadcast %cst_42 : f32 to vector<16x128xf32>
    %249 = arith.subf %248, %247 : vector<16x128xf32>
    %250 = math.exp %249 : vector<16x128xf32>
    %251 = math.log1p %250 : vector<16x128xf32>
    %252 = arith.addf %246, %251 : vector<16x128xf32>
    %c0_43 = arith.constant 0 : index
    %c0_44 = arith.constant 0 : index
    %253 = vector.load %arg17[%c0_43, %c0_44] : memref<16x1xf32, #tpu.memory_space<vmem>>, vector<16x1xf32>
    %254 = arith.mulf %242, %252 : vector<16x128xf32>
    %cst_45 = arith.constant dense<0.000000e+00> : vector<16xf32>
    %255 = vector.multi_reduction <add>, %254, %cst_45 [1] : vector<16x128xf32> to vector<16xf32>
    %256 = vector.shape_cast %255 : vector<16xf32> to vector<16x1xf32>
    %257 = arith.addf %253, %256 : vector<16x1xf32>
    %c0_46 = arith.constant 0 : index
    %c0_47 = arith.constant 0 : index
    %258 = vector.load %arg17[%c0_46, %c0_47] : memref<16x1xf32, #tpu.memory_space<vmem>>, vector<16x1xf32>
    tpu.vector_store %arg17[%c0_46, %c0_47], %257 {strides = array<i32>} : memref<16x1xf32, #tpu.memory_space<vmem>>, vector<16x1xf32>,
    %c0_48 = arith.constant 0 : index
    %c0_49 = arith.constant 0 : index
    %259 = vector.load %arg14[%c0_48, %c0_49] : memref<16x1xf32, #tpu.memory_space<vmem>>, vector<16x1xf32>
    %cst_50 = arith.constant dense<0xFF800000> : vector<16xf32>
    %260 = vector.multi_reduction <maximumf>, %31, %cst_50 [1] : vector<16x128xf32> to vector<16xf32>
    %261 = vector.shape_cast %260 : vector<16xf32> to vector<16x1xf32>
    %262 = arith.maximumf %259, %261 : vector<16x1xf32>
    %c0_51 = arith.constant 0 : index
    %c0_52 = arith.constant 0 : index
    %263 = vector.load %arg15[%c0_51, %c0_52] : memref<16x1xf32, #tpu.memory_space<vmem>>, vector<16x1xf32>
    %264 = arith.subf %259, %262 : vector<16x1xf32>
    %265 = math.exp %264 : vector<16x1xf32>
    %266 = arith.mulf %263, %265 : vector<16x1xf32>
    %267 = vector.broadcast %262 : vector<16x1xf32> to vector<16x128xf32>
    %268 = arith.subf %31, %267 : vector<16x128xf32>
    %269 = math.exp %268 : vector<16x128xf32>
    %cst_53 = arith.constant dense<0.000000e+00> : vector<16xf32>
    %270 = vector.multi_reduction <add>, %269, %cst_53 [1] : vector<16x128xf32> to vector<16xf32>
    %271 = vector.shape_cast %270 : vector<16xf32> to vector<16x1xf32>
    %272 = arith.addf %266, %271 : vector<16x1xf32>
    %c0_54 = arith.constant 0 : index
    %c0_55 = arith.constant 0 : index
    %273 = vector.load %arg15[%c0_54, %c0_55] : memref<16x1xf32, #tpu.memory_space<vmem>>, vector<16x1xf32>
    tpu.vector_store %arg15[%c0_54, %c0_55], %272 {strides = array<i32>} : memref<16x1xf32, #tpu.memory_space<vmem>>, vector<16x1xf32>,
    %c0_56 = arith.constant 0 : index
    %c0_57 = arith.constant 0 : index
    %274 = vector.load %arg14[%c0_56, %c0_57] : memref<16x1xf32, #tpu.memory_space<vmem>>, vector<16x1xf32>
    tpu.vector_store %arg14[%c0_56, %c0_57], %262 {strides = array<i32>} : memref<16x1xf32, #tpu.memory_space<vmem>>, vector<16x1xf32>,
    %c0_58 = arith.constant 0 : index
    %c0_59 = arith.constant 0 : index
    %275 = vector.load %arg16[%c0_58, %c0_59] : memref<16x1xf32, #tpu.memory_space<vmem>>, vector<16x1xf32>
    %276 = vector.broadcast %41 : vector<16x1xi32> to vector<16x128xi32>
    %277 = arith.cmpi eq, %38, %276 : vector<16x128xi32>
    %cst_60 = arith.constant 0.000000e+00 : f32
    %278 = vector.broadcast %cst_60 : f32 to vector<16x128xf32>
    %279 = arith.select %277, %31, %278 : vector<16x128xi1>, vector<16x128xf32>
    %cst_61 = arith.constant dense<0.000000e+00> : vector<16xf32>
    %280 = vector.multi_reduction <add>, %279, %cst_61 [1] : vector<16x128xf32> to vector<16xf32>
    %281 = vector.shape_cast %280 : vector<16xf32> to vector<16x1xf32>
    %282 = arith.addf %275, %281 : vector<16x1xf32>
    %c0_62 = arith.constant 0 : index
    %c0_63 = arith.constant 0 : index
    %283 = vector.load %arg16[%c0_62, %c0_63] : memref<16x1xf32, #tpu.memory_space<vmem>>, vector<16x1xf32>
    tpu.vector_store %arg16[%c0_62, %c0_63], %282 {strides = array<i32>} : memref<16x1xf32, #tpu.memory_space<vmem>>, vector<16x1xf32>,
    %c1_i32 = arith.constant 1 : i32
    %284 = arith.cmpi eq, %arg1, %c1_i32 : i32
    %285 = arith.extui %284 : i1 to i32
    %c0_i32_64 = arith.constant 0 : i32
    %286 = arith.cmpi ne, %285, %c0_i32_64 : i32
    scf.if %286 {
      %c-1_i32 = arith.constant -1 : i32
      %287 = vector.broadcast %c-1_i32 : i32 to vector<16x1xi32>
      %288 = arith.cmpi ne, %41, %287 : vector<16x1xi32>
      %289 = arith.extui %288 : vector<16x1xi1> to vector<16x1xi32>
      %290 = arith.sitofp %289 : vector<16x1xi32> to vector<16x1xf32>
      %c0_65 = arith.constant 0 : index
      %c0_66 = arith.constant 0 : index
      %291 = vector.load %arg14[%c0_65, %c0_66] : memref<16x1xf32, #tpu.memory_space<vmem>>, vector<16x1xf32>
      %c0_67 = arith.constant 0 : index
      %c0_68 = arith.constant 0 : index
      %292 = vector.load %arg15[%c0_67, %c0_68] : memref<16x1xf32, #tpu.memory_space<vmem>>, vector<16x1xf32>
      %293 = math.log %292 : vector<16x1xf32>
      %294 = arith.addf %291, %293 : vector<16x1xf32>
      %c0_69 = arith.constant 0 : index
      %c0_70 = arith.constant 0 : index
      %295 = vector.load %arg16[%c0_69, %c0_70] : memref<16x1xf32, #tpu.memory_space<vmem>>, vector<16x1xf32>
      %296 = arith.subf %294, %295 : vector<16x1xf32>
      %297 = arith.mulf %296, %290 : vector<16x1xf32>
      %298 = tpu.iota {dimensions = array<i32: 1>} : vector<16x128xi32>
      %c0_i32_71 = arith.constant 0 : i32
      %299 = vector.broadcast %c0_i32_71 : i32 to vector<16x128xi32>
      %300 = arith.cmpi eq, %298, %299 : vector<16x128xi32>
      %cst_72 = arith.constant 0.000000e+00 : f32
      %301 = vector.shape_cast %297 : vector<16x1xf32> to vector<16x1xf32>
      %302 = vector.broadcast %301 : vector<16x1xf32> to vector<16x128xf32>
      %303 = vector.broadcast %cst_72 : f32 to vector<16x128xf32>
      %304 = arith.select %300, %302, %303 : vector<16x128xi1>, vector<16x128xf32>
      %c1_i32_73 = arith.constant 1 : i32
      %305 = vector.broadcast %c1_i32_73 : i32 to vector<16x128xi32>
      %306 = arith.cmpi eq, %298, %305 : vector<16x128xi32>
      %cst_74 = arith.constant 0.000000e+00 : f32
      %307 = vector.shape_cast %290 : vector<16x1xf32> to vector<16x1xf32>
      %308 = vector.broadcast %307 : vector<16x1xf32> to vector<16x128xf32>
      %309 = vector.broadcast %cst_74 : f32 to vector<16x128xf32>
      %310 = arith.select %306, %308, %309 : vector<16x128xi1>, vector<16x128xf32>
      %311 = arith.addf %304, %310 : vector<16x128xf32>
      %c2_i32 = arith.constant 2 : i32
      %312 = vector.broadcast %c2_i32 : i32 to vector<16x128xi32>
      %313 = arith.cmpi eq, %298, %312 : vector<16x128xi32>
      %c0_75 = arith.constant 0 : index
      %c0_76 = arith.constant 0 : index
      %314 = vector.load %arg17[%c0_75, %c0_76] : memref<16x1xf32, #tpu.memory_space<vmem>>, vector<16x1xf32>
      %cst_77 = arith.constant 0.000000e+00 : f32
      %315 = vector.shape_cast %314 : vector<16x1xf32> to vector<16x1xf32>
      %316 = vector.broadcast %315 : vector<16x1xf32> to vector<16x128xf32>
      %317 = vector.broadcast %cst_77 : f32 to vector<16x128xf32>
      %318 = arith.select %313, %316, %317 : vector<16x128xi1>, vector<16x128xf32>
      %319 = arith.addf %311, %318 : vector<16x128xf32>
      %c0_78 = arith.constant 0 : index
      %c0_79 = arith.constant 0 : index
      %c0_80 = arith.constant 0 : index
      %320 = vector.load %arg10[%c0_78, %c0_79, %c0_80] : memref<1x16x128xf32, #tpu.memory_space<vmem>>, vector<1x16x128xf32>
      %321 = vector.shape_cast %320 : vector<1x16x128xf32> to vector<16x128xf32>
      %322 = vector.shape_cast %319 : vector<16x128xf32> to vector<1x16x128xf32>
      tpu.vector_store %arg10[%c0_78, %c0_79, %c0_80], %322 {strides = array<i32>} : memref<1x16x128xf32, #tpu.memory_space<vmem>>, vector<1x16x128xf32>,
    } else {
    }
    return
  }
  func.func @transform_0(%arg0: i32, %arg1: i32) -> (i32, i32, i32) {
    %c0_i32 = arith.constant 0 : i32
    %c0_i32_0 = arith.constant 0 : i32
    %c0_i32_1 = arith.constant 0 : i32
    return %arg0, %c0_i32, %c0_i32_0 : i32, i32, i32
  }
  func.func @transform_1(%arg0: i32, %arg1: i32) -> (i32, i32, i32) {
    %c0_i32 = arith.constant 0 : i32
    %c0_i32_0 = arith.constant 0 : i32
    %c0_i32_1 = arith.constant 0 : i32
    %c0_i32_2 = arith.constant 0 : i32
    return %c0_i32, %c0_i32_0, %c0_i32_1 : i32, i32, i32
  }
  func.func @transform_2(%arg0: i32, %arg1: i32) -> (i32, i32, i32) {
    %c0_i32 = arith.constant 0 : i32
    %c0_i32_0 = arith.constant 0 : i32
    %c0_i32_1 = arith.constant 0 : i32
    return %arg0, %c0_i32, %c0_i32_0 : i32, i32, i32
  }
  func.func @transform_3(%arg0: i32, %arg1: i32) -> (i32, i32) {
    %c0_i32 = arith.constant 0 : i32
    %c0_i32_0 = arith.constant 0 : i32
    %c0_i32_1 = arith.constant 0 : i32
    return %c0_i32, %c0_i32_0 : i32, i32
  }
  func.func @transform_4(%arg0: i32, %arg1: i32) -> (i32, i32) {
    %c0_i32 = arith.constant 0 : i32
    %c0_i32_0 = arith.constant 0 : i32
    %c0_i32_1 = arith.constant 0 : i32
    return %c0_i32, %c0_i32_0 : i32, i32
  }
  func.func @transform_5(%arg0: i32, %arg1: i32) -> (i32, i32) {
    %c0_i32 = arith.constant 0 : i32
    %c0_i32_0 = arith.constant 0 : i32
    return %c0_i32, %arg1 : i32, i32
  }
  func.func @transform_6(%arg0: i32, %arg1: i32) -> (i32, i32) {
    %c0_i32 = arith.constant 0 : i32
    %c0_i32_0 = arith.constant 0 : i32
    return %c0_i32, %arg1 : i32, i32
  }
  func.func @transform_7(%arg0: i32, %arg1: i32) -> (i32, i32, i32) {
    %c0_i32 = arith.constant 0 : i32
    %c0_i32_0 = arith.constant 0 : i32
    return %arg0, %c0_i32, %arg1 : i32, i32, i32
  }
  func.func @transform_8(%arg0: i32, %arg1: i32) -> (i32, i32, i32) {
    %c0_i32 = arith.constant 0 : i32
    %c0_i32_0 = arith.constant 0 : i32
    %c0_i32_1 = arith.constant 0 : i32
    return %arg0, %c0_i32, %c0_i32_0 : i32, i32, i32
  }
}

</mosaic_0001>

<llo_original>
// kernel: tpu_custom_call.1
$region0: #{tpu_custom_call.1}
  #allocation0 [shape = 'u32[]', space=smem, size = 0x4, offset = 0x4, fixed_abs, tag = 'smem constant byte address 0x4 - core index']
  #allocation1 [shape = 'u32[144,128]{1,0:T(1,128)}', space=vmem, size = 0x12000, scoped, tag = 'internal scratch']
  #allocation2 [shape = 'bf16[16,32]{1,0:T(8,128)(2,1)}', space=vmem, size = 0x1000, scoped, tag = 'scratch operand']
  #allocation3 [shape = 'bf16[16,32]{1,0:T(8,128)(2,1)}', space=vmem, size = 0x1000, scoped, tag = 'scratch operand']
  #allocation4 [shape = 'f32[32,128]{1,0:T(8,128)}', space=vmem, size = 0x4000, scoped, tag = 'scratch operand']
  #allocation5 [shape = 'f32[16,1]{1,0:T(8,128)}', space=vmem, size = 0x2000, scoped, tag = 'scratch operand']
  #allocation6 [shape = 'f32[16,1]{1,0:T(8,128)}', space=vmem, size = 0x2000, scoped, tag = 'scratch operand']
  #allocation7 [shape = 'f32[16,1]{1,0:T(8,128)}', space=vmem, size = 0x2000, scoped, tag = 'scratch operand']
  #allocation8 [shape = 'f32[16,1]{1,0:T(8,128)}', space=vmem, size = 0x2000, scoped, tag = 'scratch operand']
  %s0 = inlined_call_operand.hbm [shape: s32[2,16,16], index: 0, kind: input, shape index: {}]
  %s1 = inlined_call_operand.hbm [shape: s32[2,16,16], index: 1, kind: input, shape index: {}]
  %s2 = inlined_call_operand.hbm [shape: f32[2,16,32], index: 2, kind: input, shape index: {}]
  %s3 = inlined_call_operand.vmem [shape: f32[1,32], index: 3, kind: input, shape index: {}]
  %s4 = inlined_call_operand.vmem [shape: f32[1,32], index: 4, kind: input, shape index: {}]
  %s5 = inlined_call_operand.hbm [shape: bf16[32,256], index: 5, kind: input, shape index: {}]
  %s6 = inlined_call_operand.hbm [shape: bf16[32,256], index: 6, kind: input, shape index: {}]
  %s7 = inlined_call_operand.hbm [shape: f32[2,16,256], index: 7, kind: output, shape index: {0}]
  %s8 = inlined_call_operand.hbm [shape: f32[2,16,128], index: 8, kind: output, shape index: {1}]
  %9 = xla_tuple %s7, %s8
  %s10 = sld [smem:[#allocation0]]
  $region97: #{tpu_custom_call.1} parent=0
    _
  %s12 = ssub.s32 1, %s10
  %s13 = scalar_select 0, %s12, %s10
  $region1: #{tpu_custom_call.1} parent=0
    #allocation9 [shape = 'u8[16384]{0}', space=vmem, size = 0x4000, scoped, tag = 'input window, operand 0']
    #allocation10 [shape = 's32[2]{0}', space=sflag, size = 0x8, scoped, tag = 'scoped memory for tpu_custom_call.1']
    #allocation11 [shape = 's32[2]{0}', space=sflag, size = 0x8, scoped, tag = 'scoped memory for tpu_custom_call.1']
    #allocation12 [shape = 'u8[16384]{0}', space=vmem, size = 0x4000, scoped, tag = 'input window, operand 1, single buffered']
    #allocation13 [shape = 's32[1]{0}', space=sflag, size = 0x4, scoped, tag = 'scoped memory for tpu_custom_call.1']
    #allocation14 [shape = 'u8[16384]{0}', space=vmem, size = 0x4000, scoped, tag = 'input window, operand 2']
    #allocation15 [shape = 'u8[16384]{0}', space=vmem, size = 0x4000, scoped, tag = 'input window, operand 5']
    #allocation16 [shape = 'u8[16384]{0}', space=vmem, size = 0x4000, scoped, tag = 'input window, operand 6']
    #allocation17 [shape = 'u8[16384]{0}', space=vmem, size = 0x4000, scoped, tag = 'output window, operand 0']
    #allocation18 [shape = 'u8[16384]{0}', space=vmem, size = 0x4000, scoped, tag = 'output window, operand 1']
    #allocation19 [shape = 's32[2]{0}', space=sflag, size = 0x8, scoped, tag = 'scoped memory for tpu_custom_call.1']
    %14 = vsyncpa [#allocation10], 0
    %s15 = scalar_lea.sflag [#allocation10], 1
    %16 = vsyncpa %s15, 0
    %17 = vsyncpa [#allocation13], 0
    %18 = vsyncpa [#allocation11], 0
    %s19 = scalar_lea.sflag [#allocation11], 1
    %20 = vsyncpa %s19, 0
    %21 = vsyncpa [#allocation19], 0
    %s22 = scalar_lea.sflag [#allocation19], 1
    %23 = vsyncpa %s22, 0
    loop: start=0, step=1, limit=6
    $region2: #{tpu_custom_call.1} parent=1 // loop_pre_header
      _
    $region3: #{tpu_custom_call.1} parent=1 // loop_header
      %s25 = sphi 0, %s29
      %p26 = scmp.ge.s32.totalorder %s25, 6
      %s32 = sphi 0, %s44
      %s33 = sphi 0, %s40
      %s34 = sphi 0, %s32
      %s35 = sphi 0, %s33
      %s36 = sphi 0, %s34
      %s37 = sphi 0, %s35
      %s47 = sphi 0, %s49
      %s50 = sphi 0, %s47
      %s51 = sphi 0, %s50
      %s67 = sphi 0, %s51
      %s71 = sphi 0, %s71
      %s73 = sphi 0, %s71
      %s74 = sphi 0, %s73
      %s88 = sphi 0, %s74
      %s94 = sphi 0, %s96
      %s97 = sphi 0, %s94
      %s98 = sphi 0, %s97
      %s114 = sphi 0, %s98
      %s118 = sphi 0, %s118
      %s120 = sphi 0, %s118
      %s121 = sphi 0, %s120
      %s135 = sphi 0, %s121
      %s139 = sphi 0, %s139
      %s141 = sphi 0, %s139
      %s142 = sphi 0, %s141
      %s156 = sphi 0, %s142
      %s162 = sphi 0, %s164
      %s165 = sphi 0, %s162
      %s166 = sphi 0, %s165
      %s182 = sphi 0, %s166
      %s188 = sphi 0, %s190
      %s191 = sphi 0, %s188
      %s192 = sphi 0, %s191
      %s208 = sphi 0, %s192
      %s216 = sphi 0, %s218
      %s219 = sphi 0, %s216
      %s220 = sphi 0, %s219
      %s236 = sphi 0, %s220
      %s242 = sphi 0, %s244
      %s245 = sphi 0, %s242
      %s246 = sphi 0, %s245
      %s262 = sphi 0, %s246
    $region4: #{tpu_custom_call.1} parent=1 // loop_header_branch
      %28 = sbr.rel (%p26) target = $region8
    $region5: #{tpu_custom_call.1} parent=1 // loop_body
      %s30 = ssub.s32 %s25, 1
      %s31 = ssub.s32 %s25, 2
      %s38 = sadd.s32 1, %s33
      %p39 = scmp.ge.s32.totalorder %s38, 2
      %s40 = scalar_select %p39, 0, %s38
      %s41 = sadd.s32 1, %s32
      %s42 = scalar_select %p39, %s41, %s32
      %p43 = scmp.ge.s32.totalorder %s42, 2
      %s44 = scalar_select %p43, 0, %s42
      %s45 = ssub.s32 %s32, %s44
      %p46 = scmp.eq.s32.totalorder %s45, 0
      %s48 = sadd.s32 %s47, 1
      %s49 = scalar_select %p46, %s47, %s48
      %p52 = pneg %p46
      %p53 = scmp.eq.s32.totalorder %s25, 3
      %p54 = por %p52, %p53
      %p55 = scmp.ne.s32.totalorder %s47, %s50
      %p56 = scmp.eq.s32.totalorder %s25, 0
      %p57 = por %p55, %p56
      %p58 = scmp.ne.s32.totalorder %s47, %s50
      %p59 = scmp.eq.s32.totalorder %s30, 3
      %p60 = por %p58, %p59
      %p61 = scmp.ne.s32.totalorder %s50, %s51
      %p62 = scmp.eq.s32.totalorder %s30, 0
      %p63 = por %p61, %p62
      %p64 = scmp.ne.s32.totalorder %s50, %s51
      %p65 = scmp.eq.s32.totalorder %s31, 3
      %p66 = por %p64, %p65
      %p68 = scmp.ne.s32.totalorder %s51, %s67
      %p69 = scmp.eq.s32.totalorder %s31, 0
      %p70 = por %p68, %p69
      %s72 = sadd.s32 %s71, 1
      %p75 = scmp.eq.s32.totalorder %s25, 3
      %p76 = scmp.ne.s32.totalorder %s71, %s73
      %p77 = scmp.eq.s32.totalorder %s25, 0
      %p78 = por %p76, %p77
      %p79 = scmp.ne.s32.totalorder %s71, %s73
      %p80 = scmp.eq.s32.totalorder %s30, 3
      %p81 = por %p79, %p80
      %p82 = scmp.ne.s32.totalorder %s73, %s74
      %p83 = scmp.eq.s32.totalorder %s30, 0
      %p84 = por %p82, %p83
      %p85 = scmp.ne.s32.totalorder %s73, %s74
      %p86 = scmp.eq.s32.totalorder %s31, 3
      %p87 = por %p85, %p86
      %p89 = scmp.ne.s32.totalorder %s74, %s88
      %p90 = scmp.eq.s32.totalorder %s31, 0
      %p91 = por %p89, %p90
      %s92 = ssub.s32 %s32, %s44
      %p93 = scmp.eq.s32.totalorder %s92, 0
      %s95 = sadd.s32 %s94, 1
      %s96 = scalar_select %p93, %s94, %s95
      %p99 = pneg %p93
      %p100 = scmp.eq.s32.totalorder %s25, 3
      %p101 = por %p99, %p100
      %p102 = scmp.ne.s32.totalorder %s94, %s97
      %p103 = scmp.eq.s32.totalorder %s25, 0
      %p104 = por %p102, %p103
      %p105 = scmp.ne.s32.totalorder %s94, %s97
      %p106 = scmp.eq.s32.totalorder %s30, 3
      %p107 = por %p105, %p106
      %p108 = scmp.ne.s32.totalorder %s97, %s98
      %p109 = scmp.eq.s32.totalorder %s30, 0
      %p110 = por %p108, %p109
      %p111 = scmp.ne.s32.totalorder %s97, %s98
      %p112 = scmp.eq.s32.totalorder %s31, 3
      %p113 = por %p111, %p112
      %p115 = scmp.ne.s32.totalorder %s98, %s114
      %p116 = scmp.eq.s32.totalorder %s31, 0
      %p117 = por %p115, %p116
      %s119 = sadd.s32 %s118, 1
      %p122 = scmp.eq.s32.totalorder %s25, 3
      %p123 = scmp.ne.s32.totalorder %s118, %s120
      %p124 = scmp.eq.s32.totalorder %s25, 0
      %p125 = por %p123, %p124
      %p126 = scmp.ne.s32.totalorder %s118, %s120
      %p127 = scmp.eq.s32.totalorder %s30, 3
      %p128 = por %p126, %p127
      %p129 = scmp.ne.s32.totalorder %s120, %s121
      %p130 = scmp.eq.s32.totalorder %s30, 0
      %p131 = por %p129, %p130
      %p132 = scmp.ne.s32.totalorder %s120, %s121
      %p133 = scmp.eq.s32.totalorder %s31, 3
      %p134 = por %p132, %p133
      %p136 = scmp.ne.s32.totalorder %s121, %s135
      %p137 = scmp.eq.s32.totalorder %s31, 0
      %p138 = por %p136, %p137
      %s140 = sadd.s32 %s139, 1
      %p143 = scmp.eq.s32.totalorder %s25, 3
      %p144 = scmp.ne.s32.totalorder %s139, %s141
      %p145 = scmp.eq.s32.totalorder %s25, 0
      %p146 = por %p144, %p145
      %p147 = scmp.ne.s32.totalorder %s139, %s141
      %p148 = scmp.eq.s32.totalorder %s30, 3
      %p149 = por %p147, %p148
      %p150 = scmp.ne.s32.totalorder %s141, %s142
      %p151 = scmp.eq.s32.totalorder %s30, 0
      %p152 = por %p150, %p151
      %p153 = scmp.ne.s32.totalorder %s141, %s142
      %p154 = scmp.eq.s32.totalorder %s31, 3
      %p155 = por %p153, %p154
      %p157 = scmp.ne.s32.totalorder %s142, %s156
      %p158 = scmp.eq.s32.totalorder %s31, 0
      %p159 = por %p157, %p158
      %s160 = ssub.s32 %s33, %s40
      %p161 = scmp.eq.s32.totalorder %s160, 0
      %s163 = sadd.s32 %s162, 1
      %s164 = scalar_select %p161, %s162, %s163
      %p167 = pneg %p161
      %p168 = scmp.eq.s32.totalorder %s25, 3
      %p169 = por %p167, %p168
      %p170 = scmp.ne.s32.totalorder %s162, %s165
      %p171 = scmp.eq.s32.totalorder %s25, 0
      %p172 = por %p170, %p171
      %p173 = scmp.ne.s32.totalorder %s162, %s165
      %p174 = scmp.eq.s32.totalorder %s30, 3
      %p175 = por %p173, %p174
      %p176 = scmp.ne.s32.totalorder %s165, %s166
      %p177 = scmp.eq.s32.totalorder %s30, 0
      %p178 = por %p176, %p177
      %p179 = scmp.ne.s32.totalorder %s165, %s166
      %p180 = scmp.eq.s32.totalorder %s31, 3
      %p181 = por %p179, %p180
      %p183 = scmp.ne.s32.totalorder %s166, %s182
      %p184 = scmp.eq.s32.totalorder %s31, 0
      %p185 = por %p183, %p184
      %s186 = ssub.s32 %s33, %s40
      %p187 = scmp.eq.s32.totalorder %s186, 0
      %s189 = sadd.s32 %s188, 1
      %s190 = scalar_select %p187, %s188, %s189
      %p193 = pneg %p187
      %p194 = scmp.eq.s32.totalorder %s25, 3
      %p195 = por %p193, %p194
      %p196 = scmp.ne.s32.totalorder %s188, %s191
      %p197 = scmp.eq.s32.totalorder %s25, 0
      %p198 = por %p196, %p197
      %p199 = scmp.ne.s32.totalorder %s188, %s191
      %p200 = scmp.eq.s32.totalorder %s30, 3
      %p201 = por %p199, %p200
      %p202 = scmp.ne.s32.totalorder %s191, %s192
      %p203 = scmp.eq.s32.totalorder %s30, 0
      %p204 = por %p202, %p203
      %p205 = scmp.ne.s32.totalorder %s191, %s192
      %p206 = scmp.eq.s32.totalorder %s31, 3
      %p207 = por %p205, %p206
      %p209 = scmp.ne.s32.totalorder %s192, %s208
      %p210 = scmp.eq.s32.totalorder %s31, 0
      %p211 = por %p209, %p210
      %s212 = ssub.s32 %s32, %s44
      %s213 = ssub.s32 %s33, %s40
      %s214 = sor.u32 %s212, %s213
      %p215 = scmp.eq.s32.totalorder %s214, 0
      %s217 = sadd.s32 %s216, 1
      %s218 = scalar_select %p215, %s216, %s217
      %p221 = pneg %p215
      %p222 = scmp.eq.s32.totalorder %s25, 3
      %p223 = por %p221, %p222
      %p224 = scmp.ne.s32.totalorder %s216, %s219
      %p225 = scmp.eq.s32.totalorder %s25, 0
      %p226 = por %p224, %p225
      %p227 = scmp.ne.s32.totalorder %s216, %s219
      %p228 = scmp.eq.s32.totalorder %s30, 3
      %p229 = por %p227, %p228
      %p230 = scmp.ne.s32.totalorder %s219, %s220
      %p231 = scmp.eq.s32.totalorder %s30, 0
      %p232 = por %p230, %p231
      %p233 = scmp.ne.s32.totalorder %s219, %s220
      %p234 = scmp.eq.s32.totalorder %s31, 3
      %p235 = por %p233, %p234
      %p237 = scmp.ne.s32.totalorder %s220, %s236
      %p238 = scmp.eq.s32.totalorder %s31, 0
      %p239 = por %p237, %p238
      %s240 = ssub.s32 %s32, %s44
      %p241 = scmp.eq.s32.totalorder %s240, 0
      %s243 = sadd.s32 %s242, 1
      %s244 = scalar_select %p241, %s242, %s243
      %p247 = pneg %p241
      %p248 = scmp.eq.s32.totalorder %s25, 3
      %p249 = por %p247, %p248
      %p250 = scmp.ne.s32.totalorder %s242, %s245
      %p251 = scmp.eq.s32.totalorder %s25, 0
      %p252 = por %p250, %p251
      %p253 = scmp.ne.s32.totalorder %s242, %s245
      %p254 = scmp.eq.s32.totalorder %s30, 3
      %p255 = por %p253, %p254
      %p256 = scmp.ne.s32.totalorder %s245, %s246
      %p257 = scmp.eq.s32.totalorder %s30, 0
      %p258 = por %p256, %p257
      %p259 = scmp.ne.s32.totalorder %s245, %s246
      %p260 = scmp.eq.s32.totalorder %s31, 3
      %p261 = por %p259, %p260
      %p263 = scmp.ne.s32.totalorder %s246, %s262
      %p264 = scmp.eq.s32.totalorder %s31, 0
      %p265 = por %p263, %p264
      %p266 = scmp.le.s32.totalorder 1, %s25
      %p267 = scmp.lt.s32.totalorder %s25, 5
      %p268 = pnand %p266, %p267
      %p269 = pneg %p268
      // Predicated region
      $region9: #{tpu_custom_call.1} parent=5 // pred_check
        _
      $region10: #{tpu_custom_call.1} parent=5 // pred_check_branch
        %271 = sbr.rel (%p268) target = $region12
      $region11: #{tpu_custom_call.1} parent=5 // pred_region
        %s272 = ssub.s32 %s25, 1
        // Predicated region
        $region13: #{tpu_custom_call.1} parent=11 // pred_check
          %p273 = pneg %p84
        $region14: #{tpu_custom_call.1} parent=11 // pred_check_branch
          %275 = sbr.rel (%p273) target = $region16
        $region15: #{tpu_custom_call.1} parent=11 // pred_region
          %s277 = ssub.s32 512, 512
          %278 = vsyncadd [#allocation13], %s277
          %s279 = sshll.u32 [#allocation12], 4
          %s280 = int_to_ptr.vmem [resolvable:$true] %s279
          %285 = dma.hbm_to_vmem [thread:$0]  %s1, 512, %s280, [#allocation13], 128, 128, 8
        $region16: #{tpu_custom_call.1} parent=11 // pred_fallthru
          _
        // Predicated region
        $region17: #{tpu_custom_call.1} parent=11 // pred_check
          %p286 = pneg %p131
        $region18: #{tpu_custom_call.1} parent=11 // pred_check_branch
          %288 = sbr.rel (%p286) target = $region20
        $region19: #{tpu_custom_call.1} parent=11 // pred_region
          _
        $region20: #{tpu_custom_call.1} parent=11 // pred_fallthru
          _
        // Predicated region
        $region21: #{tpu_custom_call.1} parent=11 // pred_check
          %p289 = pneg %p152
        $region22: #{tpu_custom_call.1} parent=11 // pred_check_branch
          %291 = sbr.rel (%p289) target = $region24
        $region23: #{tpu_custom_call.1} parent=11 // pred_region
          _
        $region24: #{tpu_custom_call.1} parent=11 // pred_fallthru
          _
      $region12: #{tpu_custom_call.1} parent=5 // pred_fallthru
        _
      %p292 = scmp.lt.s32.totalorder %s25, 4
      // Predicated region
      $region25: #{tpu_custom_call.1} parent=5 // pred_check
        %p293 = pneg %p292
      $region26: #{tpu_custom_call.1} parent=5 // pred_check_branch
        %295 = sbr.rel (%p293) target = $region28
      $region27: #{tpu_custom_call.1} parent=5 // pred_region
        // Predicated region
        $region29: #{tpu_custom_call.1} parent=27 // pred_check
          %p296 = pneg %p57
        $region30: #{tpu_custom_call.1} parent=27 // pred_check_branch
          %298 = sbr.rel (%p296) target = $region32
        $region31: #{tpu_custom_call.1} parent=27 // pred_region
          %s299 = sand.u32 %s25, 1
          %s300 = scalar_lea.sflag [#allocation10], %s299
          %s301 = sand.u32 %s47, 1
          %s302 = smul.addr %s301, 16
          %s303 = scalar_lea.vmem [#allocation9], %s302
          %s305 = ssub.s32 256, 256
          %306 = vsyncadd %s300, %s305
          %s307 = smul.addr %s32, 2
          %s308 = smul.addr %s307, 128
          %s309 = scalar_lea.hbm %s0, %s308
          %s310 = sshll.u32 %s303, 4
          %s311 = int_to_ptr.vmem [resolvable:$true] %s310
          %316 = dma.hbm_to_vmem [thread:$0]  %s309, 256, %s311, %s300, 128, 128, 8
        $region32: #{tpu_custom_call.1} parent=27 // pred_fallthru
          _
        // Predicated region
        $region33: #{tpu_custom_call.1} parent=27 // pred_check
          %p317 = pneg %p104
        $region34: #{tpu_custom_call.1} parent=27 // pred_check_branch
          %319 = sbr.rel (%p317) target = $region36
        $region35: #{tpu_custom_call.1} parent=27 // pred_region
          %s320 = sand.u32 %s25, 1
          %s321 = scalar_lea.sflag [#allocation10], %s320
          %s322 = sand.u32 %s94, 1
          %s323 = smul.addr %s322, 16
          %s324 = scalar_lea.vmem [#allocation14], %s323
          %s326 = ssub.s32 256, 256
          %327 = vsyncadd %s321, %s326
          %s328 = smul.addr %s32, 2
          %s329 = smul.addr %s328, 128
          %s330 = scalar_lea.hbm %s2, %s329
          %s331 = sshll.u32 %s324, 4
          %s332 = int_to_ptr.vmem [resolvable:$true] %s331
          %337 = dma.hbm_to_vmem [thread:$0]  %s330, 256, %s332, %s321, 128, 128, 8
        $region36: #{tpu_custom_call.1} parent=27 // pred_fallthru
          _
        // Predicated region
        $region37: #{tpu_custom_call.1} parent=27 // pred_check
          %p338 = pneg %p172
        $region38: #{tpu_custom_call.1} parent=27 // pred_check_branch
          %340 = sbr.rel (%p338) target = $region40
        $region39: #{tpu_custom_call.1} parent=27 // pred_region
          %s341 = sand.u32 %s25, 1
          %s342 = scalar_lea.sflag [#allocation10], %s341
          %s343 = sand.u32 %s162, 1
          %s344 = smul.addr %s343, 16
          %s345 = scalar_lea.vmem [#allocation15], %s344
          %s347 = ssub.s32 256, 256
          %348 = vsyncadd %s342, %s347
          %s349 = smul.addr %s33, 64
          %s350 = scalar_lea.hbm %s5, %s349
          %s351 = sshll.u32 %s345, 4
          %s352 = int_to_ptr.vmem [resolvable:$true] %s351
          %357 = dma.hbm_to_vmem [thread:$0]  %s350, 256, %s352, %s342, 128, 64, 4
        $region40: #{tpu_custom_call.1} parent=27 // pred_fallthru
          _
        // Predicated region
        $region41: #{tpu_custom_call.1} parent=27 // pred_check
          %p358 = pneg %p198
        $region42: #{tpu_custom_call.1} parent=27 // pred_check_branch
          %360 = sbr.rel (%p358) target = $region44
        $region43: #{tpu_custom_call.1} parent=27 // pred_region
          %s361 = sand.u32 %s25, 1
          %s362 = scalar_lea.sflag [#allocation10], %s361
          %s363 = sand.u32 %s188, 1
          %s364 = smul.addr %s363, 16
          %s365 = scalar_lea.vmem [#allocation16], %s364
          %s367 = ssub.s32 256, 256
          %368 = vsyncadd %s362, %s367
          %s369 = smul.addr %s33, 64
          %s370 = scalar_lea.hbm %s6, %s369
          %s371 = sshll.u32 %s365, 4
          %s372 = int_to_ptr.vmem [resolvable:$true] %s371
          %377 = dma.hbm_to_vmem [thread:$0]  %s370, 256, %s372, %s362, 128, 64, 4
        $region44: #{tpu_custom_call.1} parent=27 // pred_fallthru
          _
      $region28: #{tpu_custom_call.1} parent=5 // pred_fallthru
        _
      %p378 = scmp.le.s32.totalorder 1, %s25
      %p379 = scmp.lt.s32.totalorder %s25, 5
      %p380 = pnand %p378, %p379
      %p381 = pneg %p380
      // Predicated region
      $region45: #{tpu_custom_call.1} parent=5 // pred_check
        _
      $region46: #{tpu_custom_call.1} parent=5 // pred_check_branch
        %383 = sbr.rel (%p380) target = $region48
      $region47: #{tpu_custom_call.1} parent=5 // pred_region
        %s384 = ssub.s32 %s25, 1
        %s385 = sand.u32 %s30, 1
        %s386 = scalar_lea.sflag [#allocation10], %s385
        %s387 = sand.u32 %s50, 1
        %s388 = smul.addr %s387, 16
        %s389 = scalar_lea.vmem [#allocation9], %s388
        // Predicated region
        $region49: #{tpu_custom_call.1} parent=47 // pred_check
          %p390 = pneg %p63
        $region50: #{tpu_custom_call.1} parent=47 // pred_check_branch
          %392 = sbr.rel (%p390) target = $region52
        $region51: #{tpu_custom_call.1} parent=47 // pred_region
          %393 = dma.done %s386, 256
        $region52: #{tpu_custom_call.1} parent=47 // pred_fallthru
          _
        // Predicated region
        $region53: #{tpu_custom_call.1} parent=47 // pred_check
          %p394 = pneg %p84
        $region54: #{tpu_custom_call.1} parent=47 // pred_check_branch
          %396 = sbr.rel (%p394) target = $region56
        $region55: #{tpu_custom_call.1} parent=47 // pred_region
          %397 = dma.done [#allocation13], 512
        $region56: #{tpu_custom_call.1} parent=47 // pred_fallthru
          _
        %s398 = sand.u32 %s30, 1
        %s399 = scalar_lea.sflag [#allocation10], %s398
        %s400 = sand.u32 %s97, 1
        %s401 = smul.addr %s400, 16
        %s402 = scalar_lea.vmem [#allocation14], %s401
        // Predicated region
        $region57: #{tpu_custom_call.1} parent=47 // pred_check
          %p403 = pneg %p110
        $region58: #{tpu_custom_call.1} parent=47 // pred_check_branch
          %405 = sbr.rel (%p403) target = $region60
        $region59: #{tpu_custom_call.1} parent=47 // pred_region
          %406 = dma.done %s399, 256
        $region60: #{tpu_custom_call.1} parent=47 // pred_fallthru
          _
        %s407 = sand.u32 %s30, 1
        %s408 = scalar_lea.sflag [#allocation10], %s407
        %s409 = sand.u32 %s165, 1
        %s410 = smul.addr %s409, 16
        %s411 = scalar_lea.vmem [#allocation15], %s410
        // Predicated region
        $region61: #{tpu_custom_call.1} parent=47 // pred_check
          %p412 = pneg %p178
        $region62: #{tpu_custom_call.1} parent=47 // pred_check_branch
          %414 = sbr.rel (%p412) target = $region64
        $region63: #{tpu_custom_call.1} parent=47 // pred_region
          %415 = dma.done %s408, 256
        $region64: #{tpu_custom_call.1} parent=47 // pred_fallthru
          _
        %s416 = sand.u32 %s30, 1
        %s417 = scalar_lea.sflag [#allocation10], %s416
        %s418 = sand.u32 %s191, 1
        %s419 = smul.addr %s418, 16
        %s420 = scalar_lea.vmem [#allocation16], %s419
        // Predicated region
        $region65: #{tpu_custom_call.1} parent=47 // pred_check
          %p421 = pneg %p204
        $region66: #{tpu_custom_call.1} parent=47 // pred_check_branch
          %423 = sbr.rel (%p421) target = $region68
        $region67: #{tpu_custom_call.1} parent=47 // pred_region
          %424 = dma.done %s417, 256
        $region68: #{tpu_custom_call.1} parent=47 // pred_fallthru
          _
        %s425 = sand.u32 %s30, 1
        %s426 = scalar_lea.sflag [#allocation10], %s425
        %s427 = sand.u32 %s50, 1
        %s428 = smul.addr %s427, 16
        %s429 = scalar_lea.vmem [#allocation9], %s428
        %p430 = pneg %p63
        %p431 = pneg %p60
        %p432 = pneg %p84
        %p433 = pneg %p81
        %s434 = sand.u32 %s30, 1
        %s435 = scalar_lea.sflag [#allocation10], %s434
        %s436 = sand.u32 %s97, 1
        %s437 = smul.addr %s436, 16
        %s438 = scalar_lea.vmem [#allocation14], %s437
        %p439 = pneg %p110
        %p440 = pneg %p107
        %p441 = pneg %p131
        %p442 = pneg %p128
        %p443 = pneg %p152
        %p444 = pneg %p149
        %s445 = sand.u32 %s30, 1
        %s446 = scalar_lea.sflag [#allocation10], %s445
        %s447 = sand.u32 %s165, 1
        %s448 = smul.addr %s447, 16
        %s449 = scalar_lea.vmem [#allocation15], %s448
        %p450 = pneg %p178
        %p451 = pneg %p175
        %s452 = sand.u32 %s30, 1
        %s453 = scalar_lea.sflag [#allocation10], %s452
        %s454 = sand.u32 %s191, 1
        %s455 = smul.addr %s454, 16
        %s456 = scalar_lea.vmem [#allocation16], %s455
        %p457 = pneg %p204
        %p458 = pneg %p201
        %p459 = pneg %p232
        %p460 = pneg %p229
        %s461 = sand.u32 %s219, 1
        %s462 = scalar_lea.sflag [#allocation11], %s461
        %s463 = sand.u32 %s219, 1
        %s464 = smul.addr %s463, 16
        %s465 = scalar_lea.vmem [#allocation17], %s464
        %p466 = pneg %p258
        %p467 = pneg %p255
        %s468 = sand.u32 %s245, 1
        %s469 = scalar_lea.sflag [#allocation19], %s468
        %s470 = sand.u32 %s245, 1
        %s471 = smul.addr %s470, 16
        %s472 = scalar_lea.vmem [#allocation18], %s471
        %p474 = scmp.eq.s32.totalorder %s35, 0
        // Predicated region
        $region69: #{tpu_custom_call.1} parent=47 // pred_check
          %p475 = pneg %p474
        $region70: #{tpu_custom_call.1} parent=47 // pred_check_branch
          %477 = sbr.rel (%p475) target = $region72
        $region71: #{tpu_custom_call.1} parent=47 // pred_region
          %v478 = vld [vmem:[%s402] sm:$0xff]
          %v479 = vld [vmem:[%s402 + $0x8] sm:$0xff]
          %v480 = vmul.f32 %v478, %v478
          %v481 = vmul.f32 %v479, %v479
          %vm482 = vcmask 261120
          %v483 = vsel %vm482, %v480, 0.0
          %484 = vadd.xlane.f32.xlu0 %v483
          %v485 = vpop.xlane.xlu0 %484
          %v486 = vsel %vm482, %v481, 0.0
          %487 = vadd.xlane.f32.xlu0 %v486
          %v488 = vpop.xlane.xlu0 %487
          %v489 = vrcp.pop 32.0
          %v490 = vmul.f32 %v485, %v489
          %v491 = vmul.f32 %v488, %v489
          %v492 = vadd.f32 %v490, 1e-06
          %v493 = vadd.f32 %v491, 1e-06
          %v494 = vrsqrt.pop %v492
          %v495 = vrsqrt.pop %v493
          %v496 = vmul.f32 %v478, %v494
          %v497 = vmul.f32 %v479, %v495
          %v498 = vld [vmem:[%s3] sm:$0x1]
          %v500 = vlaneseq
          %v501 = vshrl.u32 %v500, 7
          %v502 = vsub.s32 0, %v501
          %v503 = vrot.slane %v498, %v502
          %v505 = vmul.f32 %v496, %v503
          %v506 = vmul.f32 %v497, %v503
          %v507 = vmul.f32 %v505, %v505
          %v508 = vmul.f32 %v506, %v506
          %v509 = vsel %vm482, %v507, 0.0
          %510 = vadd.xlane.f32.xlu0 %v509
          %v511 = vpop.xlane.xlu0 %510
          %v512 = vsel %vm482, %v508, 0.0
          %513 = vadd.xlane.f32.xlu0 %v512
          %v514 = vpop.xlane.xlu0 %513
          %v515 = vmul.f32 %v511, %v489
          %v516 = vmul.f32 %v514, %v489
          %v517 = vadd.f32 %v515, 1e-06
          %v518 = vadd.f32 %v516, 1e-06
          %v519 = vrsqrt.pop %v517
          %v520 = vrsqrt.pop %v518
          %v521 = vmul.f32 %v505, %v519
          %v522 = vmul.f32 %v506, %v520
          %v523 = vld [vmem:[%s4] sm:$0x1]
          %v525 = vlaneseq
          %v526 = vshrl.u32 %v525, 7
          %v527 = vsub.s32 0, %v526
          %v528 = vrot.slane %v523, %v527
          %v530 = vmul.f32 %v521, %v528
          %v531 = vmul.f32 %v522, %v528
          %v532 = vpack.c.bf16 %v506, %v505
          %v534 = vunpack.c.l.b16 %v532
          %v535 = vunpack.c.h.b16 %v532
          %v536 = vpack.c.b16 %v534, %v534
          %v537 = vpack.c.b16 %v535, %v535
          %vm540 = vcmask 257024
          %541 = vst.msk [vmem:[#allocation2] sm:$0xf] %vm540, %v536
          %542 = vst.msk [vmem:[#allocation2 + $0x4] sm:$0xf] %vm540, %v537
          %v543 = vpack.c.bf16 %v531, %v530
          %v545 = vunpack.c.l.b16 %v543
          %v546 = vunpack.c.h.b16 %v543
          %v547 = vpack.c.b16 %v545, %v545
          %v548 = vpack.c.b16 %v546, %v546
          %551 = vst.msk [vmem:[#allocation3] sm:$0xf] %vm540, %v547
          %552 = vst.msk [vmem:[#allocation3 + $0x4] sm:$0xf] %vm540, %v548
          %553 = vst [vmem:[#allocation4] sm:$0xff] 0.0
          %554 = vst [vmem:[#allocation4 + $0x8] sm:$0xff] 0.0
          %vm555 = vcmask 7168
          %556 = vst.msk [vmem:[#allocation5] sm:$0xff] %vm555, -inf
          %557 = vst.msk [vmem:[#allocation5 + $0x8] sm:$0xff] %vm555, -inf
          %558 = vst.msk [vmem:[#allocation6] sm:$0xff] %vm555, 0.0
          %559 = vst.msk [vmem:[#allocation6 + $0x8] sm:$0xff] %vm555, 0.0
          %560 = vst.msk [vmem:[#allocation7] sm:$0xff] %vm555, 0.0
          %561 = vst.msk [vmem:[#allocation7 + $0x8] sm:$0xff] %vm555, 0.0
          %562 = vst.msk [vmem:[#allocation8] sm:$0xff] %vm555, 0.0
          %563 = vst.msk [vmem:[#allocation8 + $0x8] sm:$0xff] %vm555, 0.0
        $region72: #{tpu_custom_call.1} parent=47 // pred_fallthru
          _
        %v564 = vld [vmem:[#allocation2] sm:$0xf]
        %v565 = vld [vmem:[#allocation2 + $0x4] sm:$0xf]
        %v566 = vld [vmem:[%s411] sm:$0xf]
        %v567 = vld [vmem:[%s411 + $0x4] sm:$0xf]
        %v568 = vld [vmem:[%s411 + $0x8] sm:$0xf]
        %v569 = vld [vmem:[%s411 + $0xc] sm:$0xf]
        %v570 = vld [vmem:[#allocation3] sm:$0xf]
        %v571 = vld [vmem:[#allocation3 + $0x4] sm:$0xf]
        %v572 = vld [vmem:[%s420] sm:$0xf]
        %v573 = vld [vmem:[%s420 + $0x4] sm:$0xf]
        %v574 = vld [vmem:[%s420 + $0x8] sm:$0xf]
        %v575 = vld [vmem:[%s420 + $0xc] sm:$0xf]
        %v578 = vunpack.c.l.b16 %v570
        %v579 = vunpack.c.l.b16 %v571
        %v580 = vpack.c.b16 %v579, %v578
        %v585 = vunpack.c.l.b16 %v572
        %v586 = vunpack.c.l.b16 %v573
        %v587 = vunpack.c.l.b16 %v574
        %v588 = vunpack.c.l.b16 %v575
        %v589 = vpack.c.b16 %v586, %v585
        %v590 = vpack.c.b16 %v588, %v587
        %vm593 = vcmask 261120
        %v595 = vsel %vm593, %v580, 0
        %597 = vmatprep.subr.bf16.mxu0 0
        %598 = vmatpush1.bf16.msra.mxu0 0
        %599 = vmatprep.subr.bf16.mxu0 0
        %600 = vmatpush1.bf16.msra.mxu0 0
        %601 = vmatprep.subr.bf16.mxu0 0
        %602 = vmatpush1.bf16.msra.mxu0 0
        %603 = vmatprep.subr.bf16.mxu0 0
        %604 = vmatpush1.bf16.msra.mxu0 0
        %605 = vmatprep.subr.bf16.mxu0 0
        %606 = vmatpush1.bf16.msra.mxu0 0
        %607 = vmatprep.subr.bf16.mxu0 0
        %608 = vmatpush1.bf16.msra.mxu0 0
        %609 = vmatprep.subr.bf16.mxu0 0
        %610 = vmatpush1.bf16.msra.mxu0 %v590
        %611 = vmatprep.subr.bf16.mxu0 0
        %612 = vmatpush1.bf16.msra.mxu0 %v589
        %613 = vmatprep.subr.bf16.mxu0 0
        %614 = vmatpush2.bf16.msra.mxu0 0
        %615 = vmatprep.subr.bf16.mxu0 0
        %616 = vmatpush2.bf16.msra.mxu0 0
        %617 = vmatprep.subr.bf16.mxu0 0
        %618 = vmatpush2.bf16.msra.mxu0 0
        %619 = vmatprep.subr.bf16.mxu0 0
        %620 = vmatpush2.bf16.msra.mxu0 0
        %621 = vmatprep.subr.bf16.mxu0 0
        %622 = vmatpush2.bf16.msra.mxu0 0
        %623 = vmatprep.subr.bf16.mxu0 0
        %624 = vmatpush2.bf16.msra.mxu0 0
        %625 = vmatprep.subr.bf16.mxu0 0
        %626 = vmatpush2.bf16.msra.mxu0 0
        %627 = vmatprep.subr.bf16.mxu0 0
        %628 = vmatpush2.bf16.msra.mxu0 0
        %629 = vmatprep.mubr.bf16.mxu0 0
        %630 = vmatmul.mubr.bf16.gmra.mxu0 %v595
        %v631 = vpop.f32.mrf.mxu0
        %v632 = vadd.f32 0.0, %v631
        %v633 = vpop.f32.mrf.mxu0
        %v634 = vpop.f32.mrf.mxu0
        %v635 = vadd.f32 0.0, %v634
        %v636 = vpop.f32.mrf.mxu0
        %637 = vdwg.mxu0
        %638 = vst [vmem:[#allocation4 + $0x10] sm:$0xff] %v632
        %639 = vst [vmem:[#allocation4 + $0x18] sm:$0xff] %v635
        %v640 = vld [vmem:[#allocation4 + $0xf] sm:$0xff]
        %v641 = vld [vmem:[#allocation4 + $0x17] sm:$0xff]
        %v642 = vmul.f32 %v640, 0.6065307
        %v643 = vmul.f32 %v641, 0.6065307
        %v644 = vadd.f32 %v632, %v642
        %v645 = vadd.f32 %v635, %v643
        %646 = vst [vmem:[#allocation4 + $0x10] sm:$0xff] %v644
        %647 = vst [vmem:[#allocation4 + $0x18] sm:$0xff] %v645
        %v648 = vld [vmem:[#allocation4 + $0xe] sm:$0xff]
        %v649 = vld [vmem:[#allocation4 + $0x16] sm:$0xff]
        %v650 = vmul.f32 %v648, 0.3678795
        %v651 = vmul.f32 %v649, 0.3678795
        %v652 = vadd.f32 %v644, %v650
        %v653 = vadd.f32 %v645, %v651
        %654 = vst [vmem:[#allocation4 + $0x10] sm:$0xff] %v652
        %655 = vst [vmem:[#allocation4 + $0x18] sm:$0xff] %v653
        %v656 = vld [vmem:[#allocation4 + $0xc] sm:$0xff]
        %v657 = vld [vmem:[#allocation4 + $0x14] sm:$0xff]
        %v658 = vmul.f32 %v656, 0.13533533
        %v659 = vmul.f32 %v657, 0.13533533
        %v660 = vadd.f32 %v652, %v658
        %v661 = vadd.f32 %v653, %v659
        %662 = vst [vmem:[#allocation4 + $0x10] sm:$0xff] %v660
        %663 = vst [vmem:[#allocation4 + $0x18] sm:$0xff] %v661
        %v664 = vld [vmem:[#allocation4 + $0x8] sm:$0xff]
        %v665 = vld [vmem:[#allocation4 + $0x10] sm:$0xff]
        %v666 = vmul.f32 %v664, 0.01831565
        %v667 = vmul.f32 %v665, 0.01831565
        %v668 = vadd.f32 %v660, %v666
        %v669 = vadd.f32 %v661, %v667
        %v670 = vmul.f32 %v668, 0.39360136
        %v671 = vmul.f32 %v669, 0.39360136
        %v674 = vunpack.c.l.b16 %v564
        %v675 = vunpack.c.l.b16 %v565
        %v676 = vpack.c.b16 %v675, %v674
        %v681 = vunpack.c.l.b16 %v566
        %v682 = vunpack.c.l.b16 %v567
        %v683 = vunpack.c.l.b16 %v568
        %v684 = vunpack.c.l.b16 %v569
        %v685 = vpack.c.b16 %v682, %v681
        %v686 = vpack.c.b16 %v684, %v683
        %v690 = vsel %vm593, %v676, 0
        %692 = vmatprep.subr.bf16.mxu0 0
        %693 = vmatpush1.bf16.msra.mxu0 0
        %694 = vmatprep.subr.bf16.mxu0 0
        %695 = vmatpush1.bf16.msra.mxu0 0
        %696 = vmatprep.subr.bf16.mxu0 0
        %697 = vmatpush1.bf16.msra.mxu0 0
        %698 = vmatprep.subr.bf16.mxu0 0
        %699 = vmatpush1.bf16.msra.mxu0 0
        %700 = vmatprep.subr.bf16.mxu0 0
        %701 = vmatpush1.bf16.msra.mxu0 0
        %702 = vmatprep.subr.bf16.mxu0 0
        %703 = vmatpush1.bf16.msra.mxu0 0
        %704 = vmatprep.subr.bf16.mxu0 0
        %705 = vmatpush1.bf16.msra.mxu0 %v686
        %706 = vmatprep.subr.bf16.mxu0 0
        %707 = vmatpush1.bf16.msra.mxu0 %v685
        %708 = vmatprep.subr.bf16.mxu0 0
        %709 = vmatpush2.bf16.msra.mxu0 0
        %710 = vmatprep.subr.bf16.mxu0 0
        %711 = vmatpush2.bf16.msra.mxu0 0
        %712 = vmatprep.subr.bf16.mxu0 0
        %713 = vmatpush2.bf16.msra.mxu0 0
        %714 = vmatprep.subr.bf16.mxu0 0
        %715 = vmatpush2.bf16.msra.mxu0 0
        %716 = vmatprep.subr.bf16.mxu0 0
        %717 = vmatpush2.bf16.msra.mxu0 0
        %718 = vmatprep.subr.bf16.mxu0 0
        %719 = vmatpush2.bf16.msra.mxu0 0
        %720 = vmatprep.subr.bf16.mxu0 0
        %721 = vmatpush2.bf16.msra.mxu0 0
        %722 = vmatprep.subr.bf16.mxu0 0
        %723 = vmatpush2.bf16.msra.mxu0 0
        %724 = vmatprep.mubr.bf16.mxu0 0
        %725 = vmatmul.mubr.bf16.gmra.mxu0 %v690
        %v726 = vpop.f32.mrf.mxu0
        %v727 = vadd.f32 %v670, %v726
        %v728 = vpop.f32.mrf.mxu0
        %v729 = vpop.f32.mrf.mxu0
        %v730 = vadd.f32 %v671, %v729
        %v731 = vpop.f32.mrf.mxu0
        %732 = vdwg.mxu0
        %733 = vst [vmem:[%s465] sm:$0xff] %v727
        %734 = vst [vmem:[%s465 + $0x8] sm:$0xff] %v730
        %s735 = smul.u32 %s35, 128
        %v736 = vlaneseq
        %v737 = vand.u32 %v736, 127
        %v738 = vstv %s735
        %v739 = vadd.s32 %v738, %v737
        %v740 = vld [vmem:[%s389] sm:$0xff]
        %v741 = vld [vmem:[%s389 + $0x8] sm:$0xff]
        %742 = vset.pattern.permute.xlu0 0
        %743 = vperm.xlu0 %742, %v740
        %v744 = vpop.permute.xlu0 %743
        %745 = vset.pattern.permute.xlu0 0
        %746 = vperm.xlu0 %745, %v741
        %v747 = vpop.permute.xlu0 %746
        %vm748 = vcmp.eq.s32.totalorder %v744, %v739
        %vm749 = vcmp.eq.s32.totalorder %v747, %v739
        %750 = vset.pattern.permute.xlu0 1
        %751 = vperm.xlu0 %750, %v740
        %v752 = vpop.permute.xlu0 %751
        %753 = vset.pattern.permute.xlu0 1
        %754 = vperm.xlu0 %753, %v741
        %v755 = vpop.permute.xlu0 %754
        %vm756 = vcmp.eq.s32.totalorder %v752, %v739
        %vm757 = vcmp.eq.s32.totalorder %v755, %v739
        %vm758 = vmor %vm748, %vm756
        %vm759 = vmor %vm749, %vm757
        %760 = vset.pattern.permute.xlu0 2
        %761 = vperm.xlu0 %760, %v740
        %v762 = vpop.permute.xlu0 %761
        %763 = vset.pattern.permute.xlu0 2
        %764 = vperm.xlu0 %763, %v741
        %v765 = vpop.permute.xlu0 %764
        %vm766 = vcmp.eq.s32.totalorder %v762, %v739
        %vm767 = vcmp.eq.s32.totalorder %v765, %v739
        %vm768 = vmor %vm758, %vm766
        %vm769 = vmor %vm759, %vm767
        %770 = vset.pattern.permute.xlu0 3
        %771 = vperm.xlu0 %770, %v740
        %v772 = vpop.permute.xlu0 %771
        %773 = vset.pattern.permute.xlu0 3
        %774 = vperm.xlu0 %773, %v741
        %v775 = vpop.permute.xlu0 %774
        %vm776 = vcmp.eq.s32.totalorder %v772, %v739
        %vm777 = vcmp.eq.s32.totalorder %v775, %v739
        %vm778 = vmor %vm768, %vm776
        %vm779 = vmor %vm769, %vm777
        %780 = vset.pattern.permute.xlu0 4
        %781 = vperm.xlu0 %780, %v740
        %v782 = vpop.permute.xlu0 %781
        %783 = vset.pattern.permute.xlu0 4
        %784 = vperm.xlu0 %783, %v741
        %v785 = vpop.permute.xlu0 %784
        %vm786 = vcmp.eq.s32.totalorder %v782, %v739
        %vm787 = vcmp.eq.s32.totalorder %v785, %v739
        %vm788 = vmor %vm778, %vm786
        %vm789 = vmor %vm779, %vm787
        %790 = vset.pattern.permute.xlu0 5
        %791 = vperm.xlu0 %790, %v740
        %v792 = vpop.permute.xlu0 %791
        %793 = vset.pattern.permute.xlu0 5
        %794 = vperm.xlu0 %793, %v741
        %v795 = vpop.permute.xlu0 %794
        %vm796 = vcmp.eq.s32.totalorder %v792, %v739
        %vm797 = vcmp.eq.s32.totalorder %v795, %v739
        %vm798 = vmor %vm788, %vm796
        %vm799 = vmor %vm789, %vm797
        %800 = vset.pattern.permute.xlu0 6
        %801 = vperm.xlu0 %800, %v740
        %v802 = vpop.permute.xlu0 %801
        %803 = vset.pattern.permute.xlu0 6
        %804 = vperm.xlu0 %803, %v741
        %v805 = vpop.permute.xlu0 %804
        %vm806 = vcmp.eq.s32.totalorder %v802, %v739
        %vm807 = vcmp.eq.s32.totalorder %v805, %v739
        %vm808 = vmor %vm798, %vm806
        %vm809 = vmor %vm799, %vm807
        %810 = vset.pattern.permute.xlu0 7
        %811 = vperm.xlu0 %810, %v740
        %v812 = vpop.permute.xlu0 %811
        %813 = vset.pattern.permute.xlu0 7
        %814 = vperm.xlu0 %813, %v741
        %v815 = vpop.permute.xlu0 %814
        %vm816 = vcmp.eq.s32.totalorder %v812, %v739
        %vm817 = vcmp.eq.s32.totalorder %v815, %v739
        %vm818 = vmor %vm808, %vm816
        %vm819 = vmor %vm809, %vm817
        %820 = vset.pattern.permute.xlu0 8
        %821 = vperm.xlu0 %820, %v740
        %v822 = vpop.permute.xlu0 %821
        %823 = vset.pattern.permute.xlu0 8
        %824 = vperm.xlu0 %823, %v741
        %v825 = vpop.permute.xlu0 %824
        %vm826 = vcmp.eq.s32.totalorder %v822, %v739
        %vm827 = vcmp.eq.s32.totalorder %v825, %v739
        %vm828 = vmor %vm818, %vm826
        %vm829 = vmor %vm819, %vm827
        %830 = vset.pattern.permute.xlu0 9
        %831 = vperm.xlu0 %830, %v740
        %v832 = vpop.permute.xlu0 %831
        %833 = vset.pattern.permute.xlu0 9
        %834 = vperm.xlu0 %833, %v741
        %v835 = vpop.permute.xlu0 %834
        %vm836 = vcmp.eq.s32.totalorder %v832, %v739
        %vm837 = vcmp.eq.s32.totalorder %v835, %v739
        %vm838 = vmor %vm828, %vm836
        %vm839 = vmor %vm829, %vm837
        %840 = vset.pattern.permute.xlu0 10
        %841 = vperm.xlu0 %840, %v740
        %v842 = vpop.permute.xlu0 %841
        %843 = vset.pattern.permute.xlu0 10
        %844 = vperm.xlu0 %843, %v741
        %v845 = vpop.permute.xlu0 %844
        %vm846 = vcmp.eq.s32.totalorder %v842, %v739
        %vm847 = vcmp.eq.s32.totalorder %v845, %v739
        %vm848 = vmor %vm838, %vm846
        %vm849 = vmor %vm839, %vm847
        %850 = vset.pattern.permute.xlu0 11
        %851 = vperm.xlu0 %850, %v740
        %v852 = vpop.permute.xlu0 %851
        %853 = vset.pattern.permute.xlu0 11
        %854 = vperm.xlu0 %853, %v741
        %v855 = vpop.permute.xlu0 %854
        %vm856 = vcmp.eq.s32.totalorder %v852, %v739
        %vm857 = vcmp.eq.s32.totalorder %v855, %v739
        %vm858 = vmor %vm848, %vm856
        %vm859 = vmor %vm849, %vm857
        %860 = vset.pattern.permute.xlu0 12
        %861 = vperm.xlu0 %860, %v740
        %v862 = vpop.permute.xlu0 %861
        %863 = vset.pattern.permute.xlu0 12
        %864 = vperm.xlu0 %863, %v741
        %v865 = vpop.permute.xlu0 %864
        %vm866 = vcmp.eq.s32.totalorder %v862, %v739
        %vm867 = vcmp.eq.s32.totalorder %v865, %v739
        %vm868 = vmor %vm858, %vm866
        %vm869 = vmor %vm859, %vm867
        %870 = vset.pattern.permute.xlu0 13
        %871 = vperm.xlu0 %870, %v740
        %v872 = vpop.permute.xlu0 %871
        %873 = vset.pattern.permute.xlu0 13
        %874 = vperm.xlu0 %873, %v741
        %v875 = vpop.permute.xlu0 %874
        %vm876 = vcmp.eq.s32.totalorder %v872, %v739
        %vm877 = vcmp.eq.s32.totalorder %v875, %v739
        %vm878 = vmor %vm868, %vm876
        %vm879 = vmor %vm869, %vm877
        %880 = vset.pattern.permute.xlu0 14
        %881 = vperm.xlu0 %880, %v740
        %v882 = vpop.permute.xlu0 %881
        %883 = vset.pattern.permute.xlu0 14
        %884 = vperm.xlu0 %883, %v741
        %v885 = vpop.permute.xlu0 %884
        %vm886 = vcmp.eq.s32.totalorder %v882, %v739
        %vm887 = vcmp.eq.s32.totalorder %v885, %v739
        %vm888 = vmor %vm878, %vm886
        %vm889 = vmor %vm879, %vm887
        %890 = vset.pattern.permute.xlu0 15
        %891 = vperm.xlu0 %890, %v740
        %v892 = vpop.permute.xlu0 %891
        %893 = vset.pattern.permute.xlu0 15
        %894 = vperm.xlu0 %893, %v741
        %v895 = vpop.permute.xlu0 %894
        %vm896 = vcmp.eq.s32.totalorder %v892, %v739
        %vm897 = vcmp.eq.s32.totalorder %v895, %v739
        %vm898 = vmor %vm888, %vm896
        %vm899 = vmor %vm889, %vm897
        %v900 = vld [vmem:[#allocation12] sm:$0xff]
        %v901 = vld [vmem:[#allocation12 + $0x8] sm:$0xff]
        %902 = vset.pattern.permute.xlu0 0
        %903 = vperm.xlu0 %902, %v900
        %v904 = vpop.permute.xlu0 %903
        %905 = vset.pattern.permute.xlu0 0
        %906 = vperm.xlu0 %905, %v901
        %v907 = vpop.permute.xlu0 %906
        %vm908 = vcmp.eq.s32.totalorder %v904, %v739
        %vm909 = vcmp.eq.s32.totalorder %v907, %v739
        %910 = vset.pattern.permute.xlu0 1
        %911 = vperm.xlu0 %910, %v900
        %v912 = vpop.permute.xlu0 %911
        %913 = vset.pattern.permute.xlu0 1
        %914 = vperm.xlu0 %913, %v901
        %v915 = vpop.permute.xlu0 %914
        %vm916 = vcmp.eq.s32.totalorder %v912, %v739
        %vm917 = vcmp.eq.s32.totalorder %v915, %v739
        %vm918 = vmor %vm908, %vm916
        %vm919 = vmor %vm909, %vm917
        %920 = vset.pattern.permute.xlu0 2
        %921 = vperm.xlu0 %920, %v900
        %v922 = vpop.permute.xlu0 %921
        %923 = vset.pattern.permute.xlu0 2
        %924 = vperm.xlu0 %923, %v901
        %v925 = vpop.permute.xlu0 %924
        %vm926 = vcmp.eq.s32.totalorder %v922, %v739
        %vm927 = vcmp.eq.s32.totalorder %v925, %v739
        %vm928 = vmor %vm918, %vm926
        %vm929 = vmor %vm919, %vm927
        %930 = vset.pattern.permute.xlu0 3
        %931 = vperm.xlu0 %930, %v900
        %v932 = vpop.permute.xlu0 %931
        %933 = vset.pattern.permute.xlu0 3
        %934 = vperm.xlu0 %933, %v901
        %v935 = vpop.permute.xlu0 %934
        %vm936 = vcmp.eq.s32.totalorder %v932, %v739
        %vm937 = vcmp.eq.s32.totalorder %v935, %v739
        %vm938 = vmor %vm928, %vm936
        %vm939 = vmor %vm929, %vm937
        %940 = vset.pattern.permute.xlu0 4
        %941 = vperm.xlu0 %940, %v900
        %v942 = vpop.permute.xlu0 %941
        %943 = vset.pattern.permute.xlu0 4
        %944 = vperm.xlu0 %943, %v901
        %v945 = vpop.permute.xlu0 %944
        %vm946 = vcmp.eq.s32.totalorder %v942, %v739
        %vm947 = vcmp.eq.s32.totalorder %v945, %v739
        %vm948 = vmor %vm938, %vm946
        %vm949 = vmor %vm939, %vm947
        %950 = vset.pattern.permute.xlu0 5
        %951 = vperm.xlu0 %950, %v900
        %v952 = vpop.permute.xlu0 %951
        %953 = vset.pattern.permute.xlu0 5
        %954 = vperm.xlu0 %953, %v901
        %v955 = vpop.permute.xlu0 %954
        %vm956 = vcmp.eq.s32.totalorder %v952, %v739
        %vm957 = vcmp.eq.s32.totalorder %v955, %v739
        %vm958 = vmor %vm948, %vm956
        %vm959 = vmor %vm949, %vm957
        %960 = vset.pattern.permute.xlu0 6
        %961 = vperm.xlu0 %960, %v900
        %v962 = vpop.permute.xlu0 %961
        %963 = vset.pattern.permute.xlu0 6
        %964 = vperm.xlu0 %963, %v901
        %v965 = vpop.permute.xlu0 %964
        %vm966 = vcmp.eq.s32.totalorder %v962, %v739
        %vm967 = vcmp.eq.s32.totalorder %v965, %v739
        %vm968 = vmor %vm958, %vm966
        %vm969 = vmor %vm959, %vm967
        %970 = vset.pattern.permute.xlu0 7
        %971 = vperm.xlu0 %970, %v900
        %v972 = vpop.permute.xlu0 %971
        %973 = vset.pattern.permute.xlu0 7
        %974 = vperm.xlu0 %973, %v901
        %v975 = vpop.permute.xlu0 %974
        %vm976 = vcmp.eq.s32.totalorder %v972, %v739
        %vm977 = vcmp.eq.s32.totalorder %v975, %v739
        %vm978 = vmor %vm968, %vm976
        %vm979 = vmor %vm969, %vm977
        %980 = vset.pattern.permute.xlu0 8
        %981 = vperm.xlu0 %980, %v900
        %v982 = vpop.permute.xlu0 %981
        %983 = vset.pattern.permute.xlu0 8
        %984 = vperm.xlu0 %983, %v901
        %v985 = vpop.permute.xlu0 %984
        %vm986 = vcmp.eq.s32.totalorder %v982, %v739
        %vm987 = vcmp.eq.s32.totalorder %v985, %v739
        %vm988 = vmor %vm978, %vm986
        %vm989 = vmor %vm979, %vm987
        %990 = vset.pattern.permute.xlu0 9
        %991 = vperm.xlu0 %990, %v900
        %v992 = vpop.permute.xlu0 %991
        %993 = vset.pattern.permute.xlu0 9
        %994 = vperm.xlu0 %993, %v901
        %v995 = vpop.permute.xlu0 %994
        %vm996 = vcmp.eq.s32.totalorder %v992, %v739
        %vm997 = vcmp.eq.s32.totalorder %v995, %v739
        %vm998 = vmor %vm988, %vm996
        %vm999 = vmor %vm989, %vm997
        %1000 = vset.pattern.permute.xlu0 10
        %1001 = vperm.xlu0 %1000, %v900
        %v1002 = vpop.permute.xlu0 %1001
        %1003 = vset.pattern.permute.xlu0 10
        %1004 = vperm.xlu0 %1003, %v901
        %v1005 = vpop.permute.xlu0 %1004
        %vm1006 = vcmp.eq.s32.totalorder %v1002, %v739
        %vm1007 = vcmp.eq.s32.totalorder %v1005, %v739
        %vm1008 = vmor %vm998, %vm1006
        %vm1009 = vmor %vm999, %vm1007
        %1010 = vset.pattern.permute.xlu0 11
        %1011 = vperm.xlu0 %1010, %v900
        %v1012 = vpop.permute.xlu0 %1011
        %1013 = vset.pattern.permute.xlu0 11
        %1014 = vperm.xlu0 %1013, %v901
        %v1015 = vpop.permute.xlu0 %1014
        %vm1016 = vcmp.eq.s32.totalorder %v1012, %v739
        %vm1017 = vcmp.eq.s32.totalorder %v1015, %v739
        %vm1018 = vmor %vm1008, %vm1016
        %vm1019 = vmor %vm1009, %vm1017
        %1020 = vset.pattern.permute.xlu0 12
        %1021 = vperm.xlu0 %1020, %v900
        %v1022 = vpop.permute.xlu0 %1021
        %1023 = vset.pattern.permute.xlu0 12
        %1024 = vperm.xlu0 %1023, %v901
        %v1025 = vpop.permute.xlu0 %1024
        %vm1026 = vcmp.eq.s32.totalorder %v1022, %v739
        %vm1027 = vcmp.eq.s32.totalorder %v1025, %v739
        %vm1028 = vmor %vm1018, %vm1026
        %vm1029 = vmor %vm1019, %vm1027
        %1030 = vset.pattern.permute.xlu0 13
        %1031 = vperm.xlu0 %1030, %v900
        %v1032 = vpop.permute.xlu0 %1031
        %1033 = vset.pattern.permute.xlu0 13
        %1034 = vperm.xlu0 %1033, %v901
        %v1035 = vpop.permute.xlu0 %1034
        %vm1036 = vcmp.eq.s32.totalorder %v1032, %v739
        %vm1037 = vcmp.eq.s32.totalorder %v1035, %v739
        %vm1038 = vmor %vm1028, %vm1036
        %vm1039 = vmor %vm1029, %vm1037
        %1040 = vset.pattern.permute.xlu0 14
        %1041 = vperm.xlu0 %1040, %v900
        %v1042 = vpop.permute.xlu0 %1041
        %1043 = vset.pattern.permute.xlu0 14
        %1044 = vperm.xlu0 %1043, %v901
        %v1045 = vpop.permute.xlu0 %1044
        %vm1046 = vcmp.eq.s32.totalorder %v1042, %v739
        %vm1047 = vcmp.eq.s32.totalorder %v1045, %v739
        %vm1048 = vmor %vm1038, %vm1046
        %vm1049 = vmor %vm1039, %vm1047
        %1050 = vset.pattern.permute.xlu0 15
        %1051 = vperm.xlu0 %1050, %v900
        %v1052 = vpop.permute.xlu0 %1051
        %1053 = vset.pattern.permute.xlu0 15
        %1054 = vperm.xlu0 %1053, %v901
        %v1055 = vpop.permute.xlu0 %1054
        %vm1056 = vcmp.eq.s32.totalorder %v1052, %v739
        %vm1057 = vcmp.eq.s32.totalorder %v1055, %v739
        %vm1058 = vmor %vm1048, %vm1056
        %vm1059 = vmor %vm1049, %vm1057
        %s1060 = scalar_lea.vmem [#allocation12], 16
        %v1061 = vld [vmem:[%s1060] sm:$0xff]
        %v1062 = vld [vmem:[%s1060 + $0x8] sm:$0xff]
        %1063 = vset.pattern.permute.xlu0 0
        %1064 = vperm.xlu0 %1063, %v1061
        %v1065 = vpop.permute.xlu0 %1064
        %1066 = vset.pattern.permute.xlu0 0
        %1067 = vperm.xlu0 %1066, %v1062
        %v1068 = vpop.permute.xlu0 %1067
        %vm1069 = vcmp.eq.s32.totalorder %v1065, %v739
        %vm1070 = vcmp.eq.s32.totalorder %v1068, %v739
        %vm1071 = vmor %vm1058, %vm1069
        %vm1072 = vmor %vm1059, %vm1070
        %1073 = vset.pattern.permute.xlu0 1
        %1074 = vperm.xlu0 %1073, %v1061
        %v1075 = vpop.permute.xlu0 %1074
        %1076 = vset.pattern.permute.xlu0 1
        %1077 = vperm.xlu0 %1076, %v1062
        %v1078 = vpop.permute.xlu0 %1077
        %vm1079 = vcmp.eq.s32.totalorder %v1075, %v739
        %vm1080 = vcmp.eq.s32.totalorder %v1078, %v739
        %vm1081 = vmor %vm1071, %vm1079
        %vm1082 = vmor %vm1072, %vm1080
        %1083 = vset.pattern.permute.xlu0 2
        %1084 = vperm.xlu0 %1083, %v1061
        %v1085 = vpop.permute.xlu0 %1084
        %1086 = vset.pattern.permute.xlu0 2
        %1087 = vperm.xlu0 %1086, %v1062
        %v1088 = vpop.permute.xlu0 %1087
        %vm1089 = vcmp.eq.s32.totalorder %v1085, %v739
        %vm1090 = vcmp.eq.s32.totalorder %v1088, %v739
        %vm1091 = vmor %vm1081, %vm1089
        %vm1092 = vmor %vm1082, %vm1090
        %1093 = vset.pattern.permute.xlu0 3
        %1094 = vperm.xlu0 %1093, %v1061
        %v1095 = vpop.permute.xlu0 %1094
        %1096 = vset.pattern.permute.xlu0 3
        %1097 = vperm.xlu0 %1096, %v1062
        %v1098 = vpop.permute.xlu0 %1097
        %vm1099 = vcmp.eq.s32.totalorder %v1095, %v739
        %vm1100 = vcmp.eq.s32.totalorder %v1098, %v739
        %vm1101 = vmor %vm1091, %vm1099
        %vm1102 = vmor %vm1092, %vm1100
        %1103 = vset.pattern.permute.xlu0 4
        %1104 = vperm.xlu0 %1103, %v1061
        %v1105 = vpop.permute.xlu0 %1104
        %1106 = vset.pattern.permute.xlu0 4
        %1107 = vperm.xlu0 %1106, %v1062
        %v1108 = vpop.permute.xlu0 %1107
        %vm1109 = vcmp.eq.s32.totalorder %v1105, %v739
        %vm1110 = vcmp.eq.s32.totalorder %v1108, %v739
        %vm1111 = vmor %vm1101, %vm1109
        %vm1112 = vmor %vm1102, %vm1110
        %1113 = vset.pattern.permute.xlu0 5
        %1114 = vperm.xlu0 %1113, %v1061
        %v1115 = vpop.permute.xlu0 %1114
        %1116 = vset.pattern.permute.xlu0 5
        %1117 = vperm.xlu0 %1116, %v1062
        %v1118 = vpop.permute.xlu0 %1117
        %vm1119 = vcmp.eq.s32.totalorder %v1115, %v739
        %vm1120 = vcmp.eq.s32.totalorder %v1118, %v739
        %vm1121 = vmor %vm1111, %vm1119
        %vm1122 = vmor %vm1112, %vm1120
        %1123 = vset.pattern.permute.xlu0 6
        %1124 = vperm.xlu0 %1123, %v1061
        %v1125 = vpop.permute.xlu0 %1124
        %1126 = vset.pattern.permute.xlu0 6
        %1127 = vperm.xlu0 %1126, %v1062
        %v1128 = vpop.permute.xlu0 %1127
        %vm1129 = vcmp.eq.s32.totalorder %v1125, %v739
        %vm1130 = vcmp.eq.s32.totalorder %v1128, %v739
        %vm1131 = vmor %vm1121, %vm1129
        %vm1132 = vmor %vm1122, %vm1130
        %1133 = vset.pattern.permute.xlu0 7
        %1134 = vperm.xlu0 %1133, %v1061
        %v1135 = vpop.permute.xlu0 %1134
        %1136 = vset.pattern.permute.xlu0 7
        %1137 = vperm.xlu0 %1136, %v1062
        %v1138 = vpop.permute.xlu0 %1137
        %vm1139 = vcmp.eq.s32.totalorder %v1135, %v739
        %vm1140 = vcmp.eq.s32.totalorder %v1138, %v739
        %vm1141 = vmor %vm1131, %vm1139
        %vm1142 = vmor %vm1132, %vm1140
        %1143 = vset.pattern.permute.xlu0 8
        %1144 = vperm.xlu0 %1143, %v1061
        %v1145 = vpop.permute.xlu0 %1144
        %1146 = vset.pattern.permute.xlu0 8
        %1147 = vperm.xlu0 %1146, %v1062
        %v1148 = vpop.permute.xlu0 %1147
        %vm1149 = vcmp.eq.s32.totalorder %v1145, %v739
        %vm1150 = vcmp.eq.s32.totalorder %v1148, %v739
        %vm1151 = vmor %vm1141, %vm1149
        %vm1152 = vmor %vm1142, %vm1150
        %1153 = vset.pattern.permute.xlu0 9
        %1154 = vperm.xlu0 %1153, %v1061
        %v1155 = vpop.permute.xlu0 %1154
        %1156 = vset.pattern.permute.xlu0 9
        %1157 = vperm.xlu0 %1156, %v1062
        %v1158 = vpop.permute.xlu0 %1157
        %vm1159 = vcmp.eq.s32.totalorder %v1155, %v739
        %vm1160 = vcmp.eq.s32.totalorder %v1158, %v739
        %vm1161 = vmor %vm1151, %vm1159
        %vm1162 = vmor %vm1152, %vm1160
        %1163 = vset.pattern.permute.xlu0 10
        %1164 = vperm.xlu0 %1163, %v1061
        %v1165 = vpop.permute.xlu0 %1164
        %1166 = vset.pattern.permute.xlu0 10
        %1167 = vperm.xlu0 %1166, %v1062
        %v1168 = vpop.permute.xlu0 %1167
        %vm1169 = vcmp.eq.s32.totalorder %v1165, %v739
        %vm1170 = vcmp.eq.s32.totalorder %v1168, %v739
        %vm1171 = vmor %vm1161, %vm1169
        %vm1172 = vmor %vm1162, %vm1170
        %1173 = vset.pattern.permute.xlu0 11
        %1174 = vperm.xlu0 %1173, %v1061
        %v1175 = vpop.permute.xlu0 %1174
        %1176 = vset.pattern.permute.xlu0 11
        %1177 = vperm.xlu0 %1176, %v1062
        %v1178 = vpop.permute.xlu0 %1177
        %vm1179 = vcmp.eq.s32.totalorder %v1175, %v739
        %vm1180 = vcmp.eq.s32.totalorder %v1178, %v739
        %vm1181 = vmor %vm1171, %vm1179
        %vm1182 = vmor %vm1172, %vm1180
        %1183 = vset.pattern.permute.xlu0 12
        %1184 = vperm.xlu0 %1183, %v1061
        %v1185 = vpop.permute.xlu0 %1184
        %1186 = vset.pattern.permute.xlu0 12
        %1187 = vperm.xlu0 %1186, %v1062
        %v1188 = vpop.permute.xlu0 %1187
        %vm1189 = vcmp.eq.s32.totalorder %v1185, %v739
        %vm1190 = vcmp.eq.s32.totalorder %v1188, %v739
        %vm1191 = vmor %vm1181, %vm1189
        %vm1192 = vmor %vm1182, %vm1190
        %1193 = vset.pattern.permute.xlu0 13
        %1194 = vperm.xlu0 %1193, %v1061
        %v1195 = vpop.permute.xlu0 %1194
        %1196 = vset.pattern.permute.xlu0 13
        %1197 = vperm.xlu0 %1196, %v1062
        %v1198 = vpop.permute.xlu0 %1197
        %vm1199 = vcmp.eq.s32.totalorder %v1195, %v739
        %vm1200 = vcmp.eq.s32.totalorder %v1198, %v739
        %vm1201 = vmor %vm1191, %vm1199
        %vm1202 = vmor %vm1192, %vm1200
        %1203 = vset.pattern.permute.xlu0 14
        %1204 = vperm.xlu0 %1203, %v1061
        %v1205 = vpop.permute.xlu0 %1204
        %1206 = vset.pattern.permute.xlu0 14
        %1207 = vperm.xlu0 %1206, %v1062
        %v1208 = vpop.permute.xlu0 %1207
        %vm1209 = vcmp.eq.s32.totalorder %v1205, %v739
        %vm1210 = vcmp.eq.s32.totalorder %v1208, %v739
        %vm1211 = vmor %vm1201, %vm1209
        %vm1212 = vmor %vm1202, %vm1210
        %1213 = vset.pattern.permute.xlu0 15
        %1214 = vperm.xlu0 %1213, %v1061
        %v1215 = vpop.permute.xlu0 %1214
        %1216 = vset.pattern.permute.xlu0 15
        %1217 = vperm.xlu0 %1216, %v1062
        %v1218 = vpop.permute.xlu0 %1217
        %vm1219 = vcmp.eq.s32.totalorder %v1215, %v739
        %vm1220 = vcmp.eq.s32.totalorder %v1218, %v739
        %vm1221 = vmor %vm1211, %vm1219
        %vm1222 = vmor %vm1212, %vm1220
        %v1223 = vsel %vm898, 1, 0
        %v1224 = vsel %vm899, 1, 0
        %v1225 = vcvt.s32.f32 %v1223
        %v1226 = vcvt.s32.f32 %v1224
        %v1227 = vsel %vm1221, 1.5, 1.0
        %v1228 = vsel %vm1222, 1.5, 1.0
        %v1229 = vmax.f32 %v632, 0.0
        %v1230 = vmax.f32 %v635, 0.0
        %v1231 = vmul.f32 %v632, %v1225
        %v1232 = vmul.f32 %v635, %v1226
        %v1233 = vsub.f32 %v1229, %v1231
        %v1234 = vsub.f32 %v1230, %v1232
        %v1235 = vand.u32 2147483647, %v632
        %v1236 = vand.u32 2147483647, %v635
        %v1237 = vsub.f32 0.0, %v1235
        %v1238 = vsub.f32 0.0, %v1236
        %v1239 = vmul.f32 %v1237, 1.442695
        %v1240 = vpow.pop %v1239
        %v1241 = vmul.f32 %v1238, 1.442695
        %v1242 = vpow.pop %v1241
        %v1243 = vadd.f32 %v1240, 1.0
        %v1244 = vlog2.pop %v1243
        %v1245 = vmul.f32 %v1244, 0.6931472
        %v1246 = vmul.f32 -0.5, %v1240
        %v1247 = vadd.f32 %v1246, 1.0
        %v1248 = vmul.f32 %v1247, %v1240
        %v1249 = vand.u32 2147483647, %v1240
        %vm1250 = vcmp.lt.f32.partialorder %v1249, 0.0004427343
        %v1251 = vsel %vm1250, %v1248, %v1245
        %v1252 = vadd.f32 %v1242, 1.0
        %v1253 = vlog2.pop %v1252
        %v1254 = vmul.f32 %v1253, 0.6931472
        %v1255 = vmul.f32 -0.5, %v1242
        %v1256 = vadd.f32 %v1255, 1.0
        %v1257 = vmul.f32 %v1256, %v1242
        %v1258 = vand.u32 2147483647, %v1242
        %vm1259 = vcmp.lt.f32.partialorder %v1258, 0.0004427343
        %v1260 = vsel %vm1259, %v1257, %v1254
        %v1261 = vadd.f32 %v1233, %v1251
        %v1262 = vadd.f32 %v1234, %v1260
        %v1263 = vld [vmem:[#allocation8] sm:$0xff]
        %v1264 = vld [vmem:[#allocation8 + $0x8] sm:$0xff]
        %v1265 = vmul.f32 %v1227, %v1261
        %v1266 = vmul.f32 %v1228, %v1262
        %1267 = vadd.xlane.f32.xlu0 %v1265
        %v1268 = vpop.xlane.xlu0 %1267
        %1269 = vadd.xlane.f32.xlu0 %v1266
        %v1270 = vpop.xlane.xlu0 %1269
        %v1271 = vadd.f32 %v1263, %v1268
        %v1272 = vadd.f32 %v1264, %v1270
        %vm1273 = vcmask 7168
        %1274 = vst.msk [vmem:[#allocation8] sm:$0xff] %vm1273, %v1271
        %1275 = vst.msk [vmem:[#allocation8 + $0x8] sm:$0xff] %vm1273, %v1272
        %v1276 = vld [vmem:[#allocation5] sm:$0xff]
        %v1277 = vld [vmem:[#allocation5 + $0x8] sm:$0xff]
        %1278 = vmax.xlane.f32.xlu0 %v727
        %v1279 = vpop.xlane.xlu0 %1278
        %1280 = vmax.xlane.f32.xlu0 %v730
        %v1281 = vpop.xlane.xlu0 %1280
        %v1282 = vmax.f32 %v1276, %v1279
        %v1283 = vmax.f32 %v1277, %v1281
        %v1284 = vld [vmem:[#allocation6] sm:$0xff]
        %v1285 = vld [vmem:[#allocation6 + $0x8] sm:$0xff]
        %v1286 = vsub.f32 %v1276, %v1282
        %v1287 = vsub.f32 %v1277, %v1283
        %v1288 = vmul.f32 %v1286, 1.442695
        %v1289 = vpow.pop %v1288
        %v1290 = vmul.f32 %v1287, 1.442695
        %v1291 = vpow.pop %v1290
        %v1292 = vmul.f32 %v1284, %v1289
        %v1293 = vmul.f32 %v1285, %v1291
        %1295 = vset.pattern.permute.xlu0 0
        %1296 = vperm.xlu0 %1295, %v1282
        %v1297 = vpop.permute.xlu0 %1296
        %1300 = vset.pattern.permute.xlu0 0
        %1301 = vperm.xlu0 %1300, %v1283
        %v1302 = vpop.permute.xlu0 %1301
        %v1304 = vsub.f32 %v727, %v1297
        %v1305 = vsub.f32 %v730, %v1302
        %v1306 = vmul.f32 %v1304, 1.442695
        %v1307 = vpow.pop %v1306
        %v1308 = vmul.f32 %v1305, 1.442695
        %v1309 = vpow.pop %v1308
        %1310 = vadd.xlane.f32.xlu0 %v1307
        %v1311 = vpop.xlane.xlu0 %1310
        %1312 = vadd.xlane.f32.xlu0 %v1309
        %v1313 = vpop.xlane.xlu0 %1312
        %v1314 = vadd.f32 %v1292, %v1311
        %v1315 = vadd.f32 %v1293, %v1313
        %1316 = vst.msk [vmem:[#allocation6] sm:$0xff] %vm1273, %v1314
        %1317 = vst.msk [vmem:[#allocation6 + $0x8] sm:$0xff] %vm1273, %v1315
        %1318 = vst.msk [vmem:[#allocation5] sm:$0xff] %vm1273, %v1282
        %1319 = vst.msk [vmem:[#allocation5 + $0x8] sm:$0xff] %vm1273, %v1283
        %v1320 = vld [vmem:[#allocation7] sm:$0xff]
        %v1321 = vld [vmem:[#allocation7 + $0x8] sm:$0xff]
        %vm1322 = vcmp.eq.s32.totalorder %v739, %v744
        %vm1323 = vcmp.eq.s32.totalorder %v739, %v747
        %v1324 = vsel %vm1322, %v727, 0.0
        %v1325 = vsel %vm1323, %v730, 0.0
        %1326 = vadd.xlane.f32.xlu0 %v1324
        %v1327 = vpop.xlane.xlu0 %1326
        %1328 = vadd.xlane.f32.xlu0 %v1325
        %v1329 = vpop.xlane.xlu0 %1328
        %v1330 = vadd.f32 %v1320, %v1327
        %v1331 = vadd.f32 %v1321, %v1329
        %1332 = vst.msk [vmem:[#allocation7] sm:$0xff] %vm1273, %v1330
        %1333 = vst.msk [vmem:[#allocation7 + $0x8] sm:$0xff] %vm1273, %v1331
        %p1334 = scmp.eq.s32.totalorder %s35, 1
        // Predicated region
        $region73: #{tpu_custom_call.1} parent=47 // pred_check
          %p1335 = pneg %p1334
        $region74: #{tpu_custom_call.1} parent=47 // pred_check_branch
          %1337 = sbr.rel (%p1335) target = $region76
        $region75: #{tpu_custom_call.1} parent=47 // pred_region
          %vm1338 = vcmp.ne.s32.totalorder %v740, 4294967295
          %vm1339 = vcmp.ne.s32.totalorder %v741, 4294967295
          %v1340 = vsel %vm1338, 1, 0
          %v1341 = vsel %vm1339, 1, 0
          %v1342 = vcvt.s32.f32 %v1340
          %v1343 = vcvt.s32.f32 %v1341
          %v1344 = vld [vmem:[#allocation5] sm:$0xff]
          %v1345 = vld [vmem:[#allocation5 + $0x8] sm:$0xff]
          %v1346 = vld [vmem:[#allocation6] sm:$0xff]
          %v1347 = vld [vmem:[#allocation6 + $0x8] sm:$0xff]
          %v1348 = vlog2.pop %v1346
          %v1349 = vmul.f32 %v1348, 0.6931472
          %v1350 = vlog2.pop %v1347
          %v1351 = vmul.f32 %v1350, 0.6931472
          %v1352 = vadd.f32 %v1344, %v1349
          %v1353 = vadd.f32 %v1345, %v1351
          %v1354 = vld [vmem:[#allocation7] sm:$0xff]
          %v1355 = vld [vmem:[#allocation7 + $0x8] sm:$0xff]
          %v1356 = vsub.f32 %v1352, %v1354
          %v1357 = vsub.f32 %v1353, %v1355
          %v1358 = vmul.f32 %v1356, %v1342
          %v1359 = vmul.f32 %v1357, %v1343
          %vm1360 = vcmp.eq.s32.totalorder %v737, 0
          %1362 = vset.pattern.permute.xlu0 0
          %1363 = vperm.xlu0 %1362, %v1358
          %v1364 = vpop.permute.xlu0 %1363
          %1367 = vset.pattern.permute.xlu0 0
          %1368 = vperm.xlu0 %1367, %v1359
          %v1369 = vpop.permute.xlu0 %1368
          %v1371 = vsel %vm1360, %v1364, 0.0
          %v1372 = vsel %vm1360, %v1369, 0.0
          %vm1373 = vcmp.eq.s32.totalorder %v737, 1
          %1375 = vset.pattern.permute.xlu0 0
          %1376 = vperm.xlu0 %1375, %v1342
          %v1377 = vpop.permute.xlu0 %1376
          %1380 = vset.pattern.permute.xlu0 0
          %1381 = vperm.xlu0 %1380, %v1343
          %v1382 = vpop.permute.xlu0 %1381
          %v1384 = vsel %vm1373, %v1377, 0.0
          %v1385 = vsel %vm1373, %v1382, 0.0
          %v1386 = vadd.f32 %v1371, %v1384
          %v1387 = vadd.f32 %v1372, %v1385
          %vm1388 = vcmp.eq.s32.totalorder %v737, 2
          %v1389 = vld [vmem:[#allocation8] sm:$0xff]
          %v1390 = vld [vmem:[#allocation8 + $0x8] sm:$0xff]
          %1392 = vset.pattern.permute.xlu0 0
          %1393 = vperm.xlu0 %1392, %v1389
          %v1394 = vpop.permute.xlu0 %1393
          %1397 = vset.pattern.permute.xlu0 0
          %1398 = vperm.xlu0 %1397, %v1390
          %v1399 = vpop.permute.xlu0 %1398
          %v1401 = vsel %vm1388, %v1394, 0.0
          %v1402 = vsel %vm1388, %v1399, 0.0
          %v1403 = vadd.f32 %v1386, %v1401
          %v1404 = vadd.f32 %v1387, %v1402
          %1405 = vst [vmem:[%s472] sm:$0xff] %v1403
          %1406 = vst [vmem:[%s472 + $0x8] sm:$0xff] %v1404
        $region76: #{tpu_custom_call.1} parent=47 // pred_fallthru
          _
        %s1407 = sand.u32 %s219, 1
        %s1408 = scalar_lea.sflag [#allocation11], %s1407
        %s1409 = sand.u32 %s219, 1
        %s1410 = smul.addr %s1409, 16
        %s1411 = scalar_lea.vmem [#allocation17], %s1410
        %s1412 = sand.u32 %s245, 1
        %s1413 = scalar_lea.sflag [#allocation19], %s1412
        %s1414 = sand.u32 %s245, 1
        %s1415 = smul.addr %s1414, 16
        %s1416 = scalar_lea.vmem [#allocation18], %s1415
        // Predicated region
        $region77: #{tpu_custom_call.1} parent=47 // pred_check
          %p1417 = pneg %p229
        $region78: #{tpu_custom_call.1} parent=47 // pred_check_branch
          %1419 = sbr.rel (%p1417) target = $region80
        $region79: #{tpu_custom_call.1} parent=47 // pred_region
          %s1421 = ssub.s32 256, 256
          %1422 = vsyncadd %s1408, %s1421
          %s1423 = smul.addr %s34, 4
          %s1424 = sadd.s32 %s35, %s1423
          %s1425 = smul.addr %s1424, 128
          %s1426 = scalar_lea.hbm %s7, %s1425
          %s1427 = sshll.u32 %s1411, 4
          %s1428 = int_to_ptr.vmem [resolvable:$true] %s1427
          %1433 = dma.vmem_to_hbm [thread:$0]  %s1428, 256, %s1426, %s1408, 128, 256, 8
        $region80: #{tpu_custom_call.1} parent=47 // pred_fallthru
          _
        // Predicated region
        $region81: #{tpu_custom_call.1} parent=47 // pred_check
          %p1434 = pneg %p255
        $region82: #{tpu_custom_call.1} parent=47 // pred_check_branch
          %1436 = sbr.rel (%p1434) target = $region84
        $region83: #{tpu_custom_call.1} parent=47 // pred_region
          %s1438 = ssub.s32 256, 256
          %1439 = vsyncadd %s1413, %s1438
          %s1440 = smul.addr %s34, 2
          %s1441 = smul.addr %s1440, 128
          %s1442 = scalar_lea.hbm %s8, %s1441
          %s1443 = sshll.u32 %s1416, 4
          %s1444 = int_to_ptr.vmem [resolvable:$true] %s1443
          %1449 = dma.vmem_to_hbm [thread:$0]  %s1444, 256, %s1442, %s1413, 128, 128, 8
        $region84: #{tpu_custom_call.1} parent=47 // pred_fallthru
          _
      $region48: #{tpu_custom_call.1} parent=5 // pred_fallthru
        _
      %p1450 = scmp.le.s32.totalorder 2, %s25
      // Predicated region
      $region85: #{tpu_custom_call.1} parent=5 // pred_check
        %p1451 = pneg %p1450
      $region86: #{tpu_custom_call.1} parent=5 // pred_check_branch
        %1453 = sbr.rel (%p1451) target = $region88
      $region87: #{tpu_custom_call.1} parent=5 // pred_region
        %s1454 = ssub.s32 %s25, 2
        // Predicated region
        $region89: #{tpu_custom_call.1} parent=87 // pred_check
          %p1455 = pneg %p235
        $region90: #{tpu_custom_call.1} parent=87 // pred_check_branch
          %1457 = sbr.rel (%p1455) target = $region92
        $region91: #{tpu_custom_call.1} parent=87 // pred_region
          %s1458 = sand.u32 %s220, 1
          %s1459 = scalar_lea.sflag [#allocation11], %s1458
          %s1460 = sand.u32 %s220, 1
          %s1461 = smul.addr %s1460, 16
          %s1462 = scalar_lea.vmem [#allocation17], %s1461
          %1463 = dma.done %s1459, 256
        $region92: #{tpu_custom_call.1} parent=87 // pred_fallthru
          _
        // Predicated region
        $region93: #{tpu_custom_call.1} parent=87 // pred_check
          %p1464 = pneg %p261
        $region94: #{tpu_custom_call.1} parent=87 // pred_check_branch
          %1466 = sbr.rel (%p1464) target = $region96
        $region95: #{tpu_custom_call.1} parent=87 // pred_region
          %s1467 = sand.u32 %s246, 1
          %s1468 = scalar_lea.sflag [#allocation19], %s1467
          %s1469 = sand.u32 %s246, 1
          %s1470 = smul.addr %s1469, 16
          %s1471 = scalar_lea.vmem [#allocation18], %s1470
          %1472 = dma.done %s1468, 256
        $region96: #{tpu_custom_call.1} parent=87 // pred_fallthru
          _
      $region88: #{tpu_custom_call.1} parent=5 // pred_fallthru
        _
    $region6: #{tpu_custom_call.1} parent=1 // loop_footer
      %s29 = sadd.s32 1, %s25
    $region7: #{tpu_custom_call.1} parent=1 // loop_footer_branch
      %24 = sbr.rel target = $region3
    $region8: #{tpu_custom_call.1} parent=1 // loop_exit
      _
    %1473 = vsyncpa [#allocation10], 1
    %s1474 = scalar_lea.sflag [#allocation10], 1
    %1475 = vsyncpa %s1474, 1
    %1476 = vsyncpa [#allocation13], 1
    %1477 = vsyncpa [#allocation11], 1
    %s1478 = scalar_lea.sflag [#allocation11], 1
    %1479 = vsyncpa %s1478, 1
    %1480 = vsyncpa [#allocation19], 1
    %s1481 = scalar_lea.sflag [#allocation19], 1
    %1482 = vsyncpa %s1481, 1

</llo_original>
